<compile_context>
chip_gen: v5e
topology: v5e:2x2
jax: 0.10.0
libtpu: 0.0.40
codegen_flags: <defaults>
</compile_context>

<pallas_src>
import jax
import jax.numpy as jnp
import numpy as np
from jax import lax
from jax.experimental import pallas as pl
from jax.experimental.pallas import tpu as pltpu

# ------------------------- synthetic T5 config (small) ------------------------
D_MODEL = 64
N_HEADS = 4
D_KV = 16                 # N_HEADS * D_KV == D_MODEL
D_FF = 128
VOCAB = 256
N_LAYERS = 2
EPS = 1e-6
REL_BUCKETS = 32
REL_MAX_DIST = 128

_VMEM = pl.BlockSpec(memory_space=pltpu.MemorySpace.VMEM)


# ----------------------------- shared math helpers ----------------------------
def _rms(x, g):
    var = jnp.mean(x * x, axis=-1, keepdims=True)
    return x * lax.rsqrt(var + EPS) * g


def _softmax(s):
    m = jnp.max(s, axis=-1, keepdims=True)
    e = jnp.exp(s - m)
    return e / jnp.sum(e, axis=-1, keepdims=True)


# =============================== Pallas kernels ===============================
def _decoder_layer_kernel(h_ref, enc_ref, bias_ref,
                          g_sa_ref, g_ca_ref, g_ff_ref,
                          w_qkv_ref, w_osa_ref,
                          w_qca_ref, w_kvca_ref, w_oca_ref,
                          wi_ref, wo_ref, o_ref):
    """One full T5 decoder layer, fused: everything stays in VMEM/vregs."""
    b, l, d = h_ref.shape
    s = enc_ref.shape[1]
    hidden = h_ref[...]                                        # [B, L, D]

    def mha(q2, kv2, klen, bias):
        # q2: [B*Lq, H*Dk], kv2: [B*klen, 2*H*Dk] laid out [k | v], bias: [H,Lq,klen] or None
        lq = q2.shape[0] // b
        q3 = q2.reshape(b, lq, d)
        kv3 = kv2.reshape(b, klen, 2 * d)
        ctx_heads = []
        for h in range(N_HEADS):                               # static unroll over heads
            qh = q3[:, :, h * D_KV:(h + 1) * D_KV]
            kh = kv3[:, :, h * D_KV:(h + 1) * D_KV]
            vh = kv3[:, :, d + h * D_KV: d + (h + 1) * D_KV]
            sc = jnp.einsum("bqd,bkd->bqk", qh, kh,
                            preferred_element_type=jnp.float32)
            if bias is not None:
                sc = sc + bias[h][None]                        # broadcast over batch (free)
            p = _softmax(sc)
            ctx_heads.append(jnp.einsum("bqk,bkd->bqd", p, vh,
                                        preferred_element_type=jnp.float32))
        return jnp.concatenate(ctx_heads, axis=-1).reshape(b * lq, d)

    # --- self-attention (fused QKV projection, single MXU matmul N=3*D) ---
    x2 = _rms(hidden, g_sa_ref[...]).reshape(b * l, d)
    qkv = jnp.dot(x2, w_qkv_ref[...], preferred_element_type=jnp.float32)   # [B*L, 3D]
    ctx = mha(qkv[:, :d], qkv[:, d:], l, bias_ref[...])
    hidden = hidden + jnp.dot(ctx, w_osa_ref[...],
                              preferred_element_type=jnp.float32).reshape(b, l, d)

    # --- cross-attention (fused KV projection on encoder states, no bias) ---
    x2 = _rms(hidden, g_ca_ref[...]).reshape(b * l, d)
    q = jnp.dot(x2, w_qca_ref[...], preferred_element_type=jnp.float32)     # [B*L, D]
    kv = jnp.dot(enc_ref[...].reshape(b * s, d), w_kvca_ref[...],
                 preferred_element_type=jnp.float32)                        # [B*S, 2D]
    ctx = mha(q, kv, s, None)
    hidden = hidden + jnp.dot(ctx, w_oca_ref[...],
                              preferred_element_type=jnp.float32).reshape(b, l, d)

    # --- ReLU FFN ---
    x2 = _rms(hidden, g_ff_ref[...]).reshape(b * l, d)
    ff = jnp.maximum(jnp.dot(x2, wi_ref[...], preferred_element_type=jnp.float32), 0.0)
    hidden = hidden + jnp.dot(ff, wo_ref[...],
                              preferred_element_type=jnp.float32).reshape(b, l, d)

    o_ref[...] = hidden


def _lm_head_kernel(row_ref, g_ref, w_ref, o_ref):
    """Final RMSNorm (row-wise, commutes with the row-select) + F.linear(shared)."""
    x = _rms(row_ref[...], g_ref[...])                         # [B, D]
    # F.linear(x, shared) == x @ shared.T; contract on the last axis of the
    # [V, D] weight directly (no transposed copy is ever materialized).
    o_ref[...] = lax.dot_general(x, w_ref[...], (((1,), (1,)), ((), ())),
                                 preferred_element_type=jnp.float32)        # [B, V]


# ================================ kernel wrappers ==============================
def decoder_layer(hidden, enc, bias, lw):
    return pl.pallas_call(
        _decoder_layer_kernel,
        out_shape=jax.ShapeDtypeStruct(hidden.shape, jnp.float32),
        in_specs=[_VMEM] * 13,
        out_specs=_VMEM,
    )(hidden, enc, bias,
      lw["ln_sa"], lw["ln_ca"], lw["ln_ff"],
      lw["w_qkv_sa"], lw["w_o_sa"],
      lw["w_q_ca"], lw["w_kv_ca"], lw["w_o_ca"],
      lw["wi"], lw["wo"])


def reduce_lm_head(hidden, index, ln_f, shared):
    """reduce(hidden, index) + LM head.  `index` is a static Python int, so the
    one-hot mask-sum is exactly a row select done as a free static slice."""
    b, l, d = hidden.shape
    v = shared.shape[0]
    if 0 <= index < l:
        row = hidden[:, index, :]                              # [B, D]
    else:
        # Faithful to the mask-sum reduce: an out-of-range index selects nothing.
        row = jnp.zeros((b, d), jnp.float32)
    logits = pl.pallas_call(
        _lm_head_kernel,
        out_shape=jax.ShapeDtypeStruct((b, v), jnp.float32),   # lane-dense [B, 256]
        in_specs=[_VMEM] * 3,
        out_specs=_VMEM,
    )(row, ln_f, shared)
    return logits[:, None, :]                                  # [B, 1, V]


# ============================ pure-JAX reference path =========================
def ref_decoder_layer(hidden, enc, bias, lw):
    b, l, d = hidden.shape
    s = enc.shape[1]

    def split_heads(t, n):
        return t.reshape(b, n, N_HEADS, D_KV).transpose(0, 2, 1, 3)   # [B, H, n, Dk]

    def merge_heads(t, n):
        return t.transpose(0, 2, 1, 3).reshape(b, n, d)

    def attn(q, k, v, bias_):
        sc = jnp.einsum("bhqd,bhkd->bhqk", q, k)
        if bias_ is not None:
            sc = sc + bias_[None]
        p = jax.nn.softmax(sc, axis=-1)
        return jnp.einsum("bhqk,bhkd->bhqd", p, v)

    x = _rms(hidden, lw["ln_sa"])
    q, k, v = jnp.split(x @ lw["w_qkv_sa"], 3, axis=-1)
    ctx = merge_heads(attn(split_heads(q, l), split_heads(k, l), split_heads(v, l), bias), l)
    hidden = hidden + ctx @ lw["w_o_sa"]

    x = _rms(hidden, lw["ln_ca"])
    q = split_heads(x @ lw["w_q_ca"], l)
    k, v = jnp.split(enc @ lw["w_kv_ca"], 2, axis=-1)
    ctx = merge_heads(attn(q, split_heads(k, s), split_heads(v, s), None), l)
    hidden = hidden + ctx @ lw["w_o_ca"]

    x = _rms(hidden, lw["ln_ff"])
    ff = jnp.maximum(x @ lw["wi"], 0.0)
    return hidden + ff @ lw["wo"]


def ref_reduce_lm_head(hidden, index, ln_f, shared):
    hidden = _rms(hidden, ln_f)
    l = hidden.shape[1]
    mask = (jnp.arange(l) == index).astype(jnp.float32)[None, :, None]
    summed = jnp.sum(hidden * mask, axis=1, keepdims=True)     # [B, 1, D]
    return jnp.einsum("bld,vd->blv", summed, shared)


# ============================ model (glue in plain JAX) =======================
def relative_position_bias(rel_emb, seq_len):
    """T5 decoder relative-position bias (+ causal mask) -> [H, L, L] (no batch dup)."""
    ctx = jnp.arange(seq_len)[:, None]
    mem = jnp.arange(seq_len)[None, :]
    rel = mem - ctx
    rp = -jnp.minimum(rel, 0)                                  # bidirectional=False (decoder)
    max_exact = REL_BUCKETS // 2
    is_small = rp < max_exact
    rp_large = max_exact + (
        jnp.log(jnp.maximum(rp, 1).astype(jnp.float32) / max_exact)
        / jnp.log(REL_MAX_DIST / max_exact) * (REL_BUCKETS - max_exact)
    ).astype(jnp.int32)
    rp_large = jnp.minimum(rp_large, REL_BUCKETS - 1)
    buckets = jnp.where(is_small, rp, rp_large)
    bias = jnp.transpose(rel_emb[buckets], (2, 0, 1))          # [H, L, L]
    causal = (mem > ctx)[None]
    return jnp.where(causal, -1e9, bias)


def neuron_decoder_forward(params, input_ids, attention_mask, encoder_outputs,
                           index, *, use_pallas=True):
    # attention_mask is an argument of the PyTorch forward but is never passed to
    # the decoder call — it is (faithfully) unused here.
    del attention_mask
    b, l = input_ids.shape
    # TODO(synk): token-embedding gather kept in plain JAX (data-dependent row
    # gather has no clean static BlockSpec at this size).
    hidden = jnp.take(params["shared"], input_ids, axis=0)     # [B, L, D]
    bias = relative_position_bias(params["rel_bias"], l)       # [H, L, L]

    layer_fn = decoder_layer if use_pallas else ref_decoder_layer
    head_fn = reduce_lm_head if use_pallas else ref_reduce_lm_head
    for lw in params["layers"]:
        hidden = layer_fn(hidden, encoder_outputs, bias, lw)
    return head_fn(hidden, index, params["ln_f"], params["shared"])


# ============================== deterministic init ============================
def init_params(key):
    counter = [0]

    def nrm(shape, scale):
        counter[0] += 1
        return scale * jax.random.normal(jax.random.fold_in(key, counter[0]),
                                         shape, jnp.float32)

    s = D_MODEL ** -0.5
    params = {
        "shared": nrm((VOCAB, D_MODEL), 1.0),
        "rel_bias": nrm((REL_BUCKETS, N_HEADS), 0.1),
        "ln_f": jnp.ones((1, D_MODEL), jnp.float32),
        "layers": [],
    }
    for _ in range(N_LAYERS):
        params["layers"].append({
            "ln_sa": jnp.ones((1, D_MODEL), jnp.float32),
            "ln_ca": jnp.ones((1, D_MODEL), jnp.float32),
            "ln_ff": jnp.ones((1, D_MODEL), jnp.float32),
            # QKV (self-attn) and KV (cross-attn) stored pre-fused, [in, out] layout.
            "w_qkv_sa": nrm((D_MODEL, 3 * N_HEADS * D_KV), s),
            "w_o_sa": nrm((N_HEADS * D_KV, D_MODEL), s),
            "w_q_ca": nrm((D_MODEL, N_HEADS * D_KV), s),
            "w_kv_ca": nrm((D_MODEL, 2 * N_HEADS * D_KV), s),
            "w_o_ca": nrm((N_HEADS * D_KV, D_MODEL), s),
            "wi": nrm((D_MODEL, D_FF), s),
            "wo": nrm((D_FF, D_MODEL), D_FF ** -0.5),
        })
    return params


# ==================================== main ====================================
if __name__ == "__main__":
    key = jax.random.PRNGKey(0)
    pkey, ikey, ekey = jax.random.split(key, 3)
    params = init_params(pkey)

    B, MAX_LEN, ENC_LEN = 2, 8, 8
    input_ids = jax.random.randint(ikey, (B, MAX_LEN), 0, VOCAB, dtype=jnp.int32)
    attention_mask = jnp.ones((B, MAX_LEN), jnp.float32)
    encoder_outputs = jax.random.normal(ekey, (B, ENC_LEN, D_MODEL), jnp.float32)
    index = 3

    logits = neuron_decoder_forward(params, input_ids, attention_mask,
                                    encoder_outputs, index, use_pallas=True)
    logits = jax.block_until_ready(logits)

    ref = neuron_decoder_forward(params, input_ids, attention_mask,
                                 encoder_outputs, index, use_pallas=False)

    assert logits.shape == (B, 1, VOCAB), logits.shape
    np.testing.assert_allclose(np.asarray(logits), np.asarray(ref),
                               rtol=5e-2, atol=5e-2)
    print("KERNEL_OK")
</pallas_src>

<mosaic_0001>
module attributes {stable_mosaic.version = 11 : i64} {
  func.func @_decoder_layer_kernel(%arg0: memref<2x8x64xf32, #tpu.memory_space<vmem>>, %arg1: memref<2x8x64xf32, #tpu.memory_space<vmem>>, %arg2: memref<4x8x8xf32, #tpu.memory_space<vmem>>, %arg3: memref<1x64xf32, #tpu.memory_space<vmem>>, %arg4: memref<1x64xf32, #tpu.memory_space<vmem>>, %arg5: memref<1x64xf32, #tpu.memory_space<vmem>>, %arg6: memref<64x192xf32, #tpu.memory_space<vmem>>, %arg7: memref<64x64xf32, #tpu.memory_space<vmem>>, %arg8: memref<64x64xf32, #tpu.memory_space<vmem>>, %arg9: memref<64x128xf32, #tpu.memory_space<vmem>>, %arg10: memref<64x64xf32, #tpu.memory_space<vmem>>, %arg11: memref<64x128xf32, #tpu.memory_space<vmem>>, %arg12: memref<128x64xf32, #tpu.memory_space<vmem>>, %arg13: memref<2x8x64xf32, #tpu.memory_space<vmem>>) attributes {dimension_semantics = [], scalar_prefetch = 0 : i64, scratch_operands = 0 : i64, tpu.core_type = #tpu.core_type<tc>} {
    %c0 = arith.constant 0 : index
    %c0_0 = arith.constant 0 : index
    %c0_1 = arith.constant 0 : index
    %0 = vector.load %arg0[%c0, %c0_0, %c0_1] : memref<2x8x64xf32, #tpu.memory_space<vmem>>, vector<2x8x64xf32>
    %c0_2 = arith.constant 0 : index
    %c0_3 = arith.constant 0 : index
    %1 = vector.load %arg3[%c0_2, %c0_3] : memref<1x64xf32, #tpu.memory_space<vmem>>, vector<1x64xf32>
    %2 = arith.mulf %0, %0 : vector<2x8x64xf32>
    %cst = arith.constant dense<0.000000e+00> : vector<2x8xf32>
    %3 = vector.multi_reduction <add>, %2, %cst [2] : vector<2x8x64xf32> to vector<2x8xf32>
    %4 = vector.shape_cast %3 : vector<2x8xf32> to vector<2x8x1xf32>
    %cst_4 = arith.constant 6.400000e+01 : f32
    %5 = vector.broadcast %cst_4 : f32 to vector<2x8x1xf32>
    %6 = arith.divf %4, %5 : vector<2x8x1xf32>
    %cst_5 = arith.constant 9.99999997E-7 : f32
    %7 = vector.broadcast %cst_5 : f32 to vector<2x8x1xf32>
    %8 = arith.addf %6, %7 : vector<2x8x1xf32>
    %9 = math.rsqrt %8 : vector<2x8x1xf32>
    %10 = vector.broadcast %9 : vector<2x8x1xf32> to vector<2x8x64xf32>
    %11 = arith.mulf %0, %10 : vector<2x8x64xf32>
    %12 = vector.shape_cast %1 : vector<1x64xf32> to vector<1x1x64xf32>
    %13 = vector.broadcast %12 : vector<1x1x64xf32> to vector<2x8x64xf32>
    %14 = arith.mulf %11, %13 : vector<2x8x64xf32>
    %15 = vector.shape_cast %14 : vector<2x8x64xf32> to vector<16x64xf32>
    %c0_6 = arith.constant 0 : index
    %c0_7 = arith.constant 0 : index
    %16 = vector.load %arg6[%c0_6, %c0_7] : memref<64x192xf32, #tpu.memory_space<vmem>>, vector<64x192xf32>
    %cst_8 = arith.constant dense<0.000000e+00> : vector<16x192xf32>
    %17 = tpu.matmul %15, %16, %cst_8 {dimension_numbers = #tpu.dot_dimension_numbers<[1], [0], [0], [1], [0, 0, 1, 1], [], []>} : vector<16x64xf32>, vector<64x192xf32>, vector<16x192xf32> -> vector<16x192xf32>
    %18 = vector.extract_strided_slice %17 {offsets = [0, 0], sizes = [16, 64], strides = [1, 1]} : vector<16x192xf32> to vector<16x64xf32>
    %19 = vector.extract_strided_slice %17 {offsets = [0, 64], sizes = [16, 128], strides = [1, 1]} : vector<16x192xf32> to vector<16x128xf32>
    %c0_9 = arith.constant 0 : index
    %c0_10 = arith.constant 0 : index
    %c0_11 = arith.constant 0 : index
    %20 = vector.load %arg2[%c0_9, %c0_10, %c0_11] : memref<4x8x8xf32, #tpu.memory_space<vmem>>, vector<4x8x8xf32>
    %21 = vector.shape_cast %18 : vector<16x64xf32> to vector<2x8x64xf32>
    %22 = vector.shape_cast %19 : vector<16x128xf32> to vector<2x8x128xf32>
    %23 = vector.extract_strided_slice %21 {offsets = [0, 0, 0], sizes = [2, 8, 16], strides = [1, 1, 1]} : vector<2x8x64xf32> to vector<2x8x16xf32>
    %24 = vector.extract_strided_slice %22 {offsets = [0, 0, 0], sizes = [2, 8, 16], strides = [1, 1, 1]} : vector<2x8x128xf32> to vector<2x8x16xf32>
    %25 = vector.extract_strided_slice %22 {offsets = [0, 0, 64], sizes = [2, 8, 16], strides = [1, 1, 1]} : vector<2x8x128xf32> to vector<2x8x16xf32>
    "tpu.trace_start"() <{level = 10 : i32, message = "bqd,bkd->bqk"}> : () -> ()
    %cst_12 = arith.constant dense<0.000000e+00> : vector<2x8x8xf32>
    %26 = tpu.matmul %23, %24, %cst_12 {dimension_numbers = #tpu.dot_dimension_numbers<[2], [2], [1], [1], [0, 0, 0, 1, 1, 1], [0], [0]>} : vector<2x8x16xf32>, vector<2x8x16xf32>, vector<2x8x8xf32> -> vector<2x8x8xf32>
    "tpu.trace_stop"() : () -> ()
    %27 = vector.extract_strided_slice %20 {offsets = [0, 0, 0], sizes = [1, 8, 8], strides = [1, 1, 1]} : vector<4x8x8xf32> to vector<1x8x8xf32>
    %28 = vector.shape_cast %27 : vector<1x8x8xf32> to vector<8x8xf32>
    %29 = vector.shape_cast %28 : vector<8x8xf32> to vector<1x8x8xf32>
    %30 = vector.broadcast %29 : vector<1x8x8xf32> to vector<2x8x8xf32>
    %31 = arith.addf %26, %30 : vector<2x8x8xf32>
    %cst_13 = arith.constant dense<0xFF800000> : vector<2x8xf32>
    %32 = vector.multi_reduction <maximumf>, %31, %cst_13 [2] : vector<2x8x8xf32> to vector<2x8xf32>
    %33 = vector.shape_cast %32 : vector<2x8xf32> to vector<2x8x1xf32>
    %34 = vector.broadcast %33 : vector<2x8x1xf32> to vector<2x8x8xf32>
    %35 = arith.subf %31, %34 : vector<2x8x8xf32>
    %36 = math.exp %35 : vector<2x8x8xf32>
    %cst_14 = arith.constant dense<0.000000e+00> : vector<2x8xf32>
    %37 = vector.multi_reduction <add>, %36, %cst_14 [2] : vector<2x8x8xf32> to vector<2x8xf32>
    %38 = vector.shape_cast %37 : vector<2x8xf32> to vector<2x8x1xf32>
    %39 = vector.broadcast %38 : vector<2x8x1xf32> to vector<2x8x8xf32>
    %40 = arith.divf %36, %39 : vector<2x8x8xf32>
    "tpu.trace_start"() <{level = 10 : i32, message = "bqk,bkd->bqd"}> : () -> ()
    %cst_15 = arith.constant dense<0.000000e+00> : vector<2x8x16xf32>
    %41 = tpu.matmul %40, %25, %cst_15 {dimension_numbers = #tpu.dot_dimension_numbers<[2], [1], [1], [2], [0, 0, 0, 1, 1, 2], [0], [0]>} : vector<2x8x8xf32>, vector<2x8x16xf32>, vector<2x8x16xf32> -> vector<2x8x16xf32>
    "tpu.trace_stop"() : () -> ()
    %42 = vector.extract_strided_slice %21 {offsets = [0, 0, 16], sizes = [2, 8, 16], strides = [1, 1, 1]} : vector<2x8x64xf32> to vector<2x8x16xf32>
    %43 = vector.extract_strided_slice %22 {offsets = [0, 0, 16], sizes = [2, 8, 16], strides = [1, 1, 1]} : vector<2x8x128xf32> to vector<2x8x16xf32>
    %44 = vector.extract_strided_slice %22 {offsets = [0, 0, 80], sizes = [2, 8, 16], strides = [1, 1, 1]} : vector<2x8x128xf32> to vector<2x8x16xf32>
    "tpu.trace_start"() <{level = 10 : i32, message = "bqd,bkd->bqk"}> : () -> ()
    %cst_16 = arith.constant dense<0.000000e+00> : vector<2x8x8xf32>
    %45 = tpu.matmul %42, %43, %cst_16 {dimension_numbers = #tpu.dot_dimension_numbers<[2], [2], [1], [1], [0, 0, 0, 1, 1, 1], [0], [0]>} : vector<2x8x16xf32>, vector<2x8x16xf32>, vector<2x8x8xf32> -> vector<2x8x8xf32>
    "tpu.trace_stop"() : () -> ()
    %46 = vector.extract_strided_slice %20 {offsets = [1, 0, 0], sizes = [1, 8, 8], strides = [1, 1, 1]} : vector<4x8x8xf32> to vector<1x8x8xf32>
    %47 = vector.shape_cast %46 : vector<1x8x8xf32> to vector<8x8xf32>
    %48 = vector.shape_cast %47 : vector<8x8xf32> to vector<1x8x8xf32>
    %49 = vector.broadcast %48 : vector<1x8x8xf32> to vector<2x8x8xf32>
    %50 = arith.addf %45, %49 : vector<2x8x8xf32>
    %cst_17 = arith.constant dense<0xFF800000> : vector<2x8xf32>
    %51 = vector.multi_reduction <maximumf>, %50, %cst_17 [2] : vector<2x8x8xf32> to vector<2x8xf32>
    %52 = vector.shape_cast %51 : vector<2x8xf32> to vector<2x8x1xf32>
    %53 = vector.broadcast %52 : vector<2x8x1xf32> to vector<2x8x8xf32>
    %54 = arith.subf %50, %53 : vector<2x8x8xf32>
    %55 = math.exp %54 : vector<2x8x8xf32>
    %cst_18 = arith.constant dense<0.000000e+00> : vector<2x8xf32>
    %56 = vector.multi_reduction <add>, %55, %cst_18 [2] : vector<2x8x8xf32> to vector<2x8xf32>
    %57 = vector.shape_cast %56 : vector<2x8xf32> to vector<2x8x1xf32>
    %58 = vector.broadcast %57 : vector<2x8x1xf32> to vector<2x8x8xf32>
    %59 = arith.divf %55, %58 : vector<2x8x8xf32>
    "tpu.trace_start"() <{level = 10 : i32, message = "bqk,bkd->bqd"}> : () -> ()
    %cst_19 = arith.constant dense<0.000000e+00> : vector<2x8x16xf32>
    %60 = tpu.matmul %59, %44, %cst_19 {dimension_numbers = #tpu.dot_dimension_numbers<[2], [1], [1], [2], [0, 0, 0, 1, 1, 2], [0], [0]>} : vector<2x8x8xf32>, vector<2x8x16xf32>, vector<2x8x16xf32> -> vector<2x8x16xf32>
    "tpu.trace_stop"() : () -> ()
    %61 = vector.extract_strided_slice %21 {offsets = [0, 0, 32], sizes = [2, 8, 16], strides = [1, 1, 1]} : vector<2x8x64xf32> to vector<2x8x16xf32>
    %62 = vector.extract_strided_slice %22 {offsets = [0, 0, 32], sizes = [2, 8, 16], strides = [1, 1, 1]} : vector<2x8x128xf32> to vector<2x8x16xf32>
    %63 = vector.extract_strided_slice %22 {offsets = [0, 0, 96], sizes = [2, 8, 16], strides = [1, 1, 1]} : vector<2x8x128xf32> to vector<2x8x16xf32>
    "tpu.trace_start"() <{level = 10 : i32, message = "bqd,bkd->bqk"}> : () -> ()
    %cst_20 = arith.constant dense<0.000000e+00> : vector<2x8x8xf32>
    %64 = tpu.matmul %61, %62, %cst_20 {dimension_numbers = #tpu.dot_dimension_numbers<[2], [2], [1], [1], [0, 0, 0, 1, 1, 1], [0], [0]>} : vector<2x8x16xf32>, vector<2x8x16xf32>, vector<2x8x8xf32> -> vector<2x8x8xf32>
    "tpu.trace_stop"() : () -> ()
    %65 = vector.extract_strided_slice %20 {offsets = [2, 0, 0], sizes = [1, 8, 8], strides = [1, 1, 1]} : vector<4x8x8xf32> to vector<1x8x8xf32>
    %66 = vector.shape_cast %65 : vector<1x8x8xf32> to vector<8x8xf32>
    %67 = vector.shape_cast %66 : vector<8x8xf32> to vector<1x8x8xf32>
    %68 = vector.broadcast %67 : vector<1x8x8xf32> to vector<2x8x8xf32>
    %69 = arith.addf %64, %68 : vector<2x8x8xf32>
    %cst_21 = arith.constant dense<0xFF800000> : vector<2x8xf32>
    %70 = vector.multi_reduction <maximumf>, %69, %cst_21 [2] : vector<2x8x8xf32> to vector<2x8xf32>
    %71 = vector.shape_cast %70 : vector<2x8xf32> to vector<2x8x1xf32>
    %72 = vector.broadcast %71 : vector<2x8x1xf32> to vector<2x8x8xf32>
    %73 = arith.subf %69, %72 : vector<2x8x8xf32>
    %74 = math.exp %73 : vector<2x8x8xf32>
    %cst_22 = arith.constant dense<0.000000e+00> : vector<2x8xf32>
    %75 = vector.multi_reduction <add>, %74, %cst_22 [2] : vector<2x8x8xf32> to vector<2x8xf32>
    %76 = vector.shape_cast %75 : vector<2x8xf32> to vector<2x8x1xf32>
    %77 = vector.broadcast %76 : vector<2x8x1xf32> to vector<2x8x8xf32>
    %78 = arith.divf %74, %77 : vector<2x8x8xf32>
    "tpu.trace_start"() <{level = 10 : i32, message = "bqk,bkd->bqd"}> : () -> ()
    %cst_23 = arith.constant dense<0.000000e+00> : vector<2x8x16xf32>
    %79 = tpu.matmul %78, %63, %cst_23 {dimension_numbers = #tpu.dot_dimension_numbers<[2], [1], [1], [2], [0, 0, 0, 1, 1, 2], [0], [0]>} : vector<2x8x8xf32>, vector<2x8x16xf32>, vector<2x8x16xf32> -> vector<2x8x16xf32>
    "tpu.trace_stop"() : () -> ()
    %80 = vector.extract_strided_slice %21 {offsets = [0, 0, 48], sizes = [2, 8, 16], strides = [1, 1, 1]} : vector<2x8x64xf32> to vector<2x8x16xf32>
    %81 = vector.extract_strided_slice %22 {offsets = [0, 0, 48], sizes = [2, 8, 16], strides = [1, 1, 1]} : vector<2x8x128xf32> to vector<2x8x16xf32>
    %82 = vector.extract_strided_slice %22 {offsets = [0, 0, 112], sizes = [2, 8, 16], strides = [1, 1, 1]} : vector<2x8x128xf32> to vector<2x8x16xf32>
    "tpu.trace_start"() <{level = 10 : i32, message = "bqd,bkd->bqk"}> : () -> ()
    %cst_24 = arith.constant dense<0.000000e+00> : vector<2x8x8xf32>
    %83 = tpu.matmul %80, %81, %cst_24 {dimension_numbers = #tpu.dot_dimension_numbers<[2], [2], [1], [1], [0, 0, 0, 1, 1, 1], [0], [0]>} : vector<2x8x16xf32>, vector<2x8x16xf32>, vector<2x8x8xf32> -> vector<2x8x8xf32>
    "tpu.trace_stop"() : () -> ()
    %84 = vector.extract_strided_slice %20 {offsets = [3, 0, 0], sizes = [1, 8, 8], strides = [1, 1, 1]} : vector<4x8x8xf32> to vector<1x8x8xf32>
    %85 = vector.shape_cast %84 : vector<1x8x8xf32> to vector<8x8xf32>
    %86 = vector.shape_cast %85 : vector<8x8xf32> to vector<1x8x8xf32>
    %87 = vector.broadcast %86 : vector<1x8x8xf32> to vector<2x8x8xf32>
    %88 = arith.addf %83, %87 : vector<2x8x8xf32>
    %cst_25 = arith.constant dense<0xFF800000> : vector<2x8xf32>
    %89 = vector.multi_reduction <maximumf>, %88, %cst_25 [2] : vector<2x8x8xf32> to vector<2x8xf32>
    %90 = vector.shape_cast %89 : vector<2x8xf32> to vector<2x8x1xf32>
    %91 = vector.broadcast %90 : vector<2x8x1xf32> to vector<2x8x8xf32>
    %92 = arith.subf %88, %91 : vector<2x8x8xf32>
    %93 = math.exp %92 : vector<2x8x8xf32>
    %cst_26 = arith.constant dense<0.000000e+00> : vector<2x8xf32>
    %94 = vector.multi_reduction <add>, %93, %cst_26 [2] : vector<2x8x8xf32> to vector<2x8xf32>
    %95 = vector.shape_cast %94 : vector<2x8xf32> to vector<2x8x1xf32>
    %96 = vector.broadcast %95 : vector<2x8x1xf32> to vector<2x8x8xf32>
    %97 = arith.divf %93, %96 : vector<2x8x8xf32>
    "tpu.trace_start"() <{level = 10 : i32, message = "bqk,bkd->bqd"}> : () -> ()
    %cst_27 = arith.constant dense<0.000000e+00> : vector<2x8x16xf32>
    %98 = tpu.matmul %97, %82, %cst_27 {dimension_numbers = #tpu.dot_dimension_numbers<[2], [1], [1], [2], [0, 0, 0, 1, 1, 2], [0], [0]>} : vector<2x8x8xf32>, vector<2x8x16xf32>, vector<2x8x16xf32> -> vector<2x8x16xf32>
    "tpu.trace_stop"() : () -> ()
    %99 = tpu.concatenate %41, %60, %79, %98 in 2 : vector<2x8x16xf32>, vector<2x8x16xf32>, vector<2x8x16xf32>, vector<2x8x16xf32> -> vector<2x8x64xf32>
    %100 = vector.shape_cast %99 : vector<2x8x64xf32> to vector<16x64xf32>
    %c0_28 = arith.constant 0 : index
    %c0_29 = arith.constant 0 : index
    %101 = vector.load %arg7[%c0_28, %c0_29] : memref<64x64xf32, #tpu.memory_space<vmem>>, vector<64x64xf32>
    %cst_30 = arith.constant dense<0.000000e+00> : vector<16x64xf32>
    %102 = tpu.matmul %100, %101, %cst_30 {dimension_numbers = #tpu.dot_dimension_numbers<[1], [0], [0], [1], [0, 0, 1, 1], [], []>} : vector<16x64xf32>, vector<64x64xf32>, vector<16x64xf32> -> vector<16x64xf32>
    %103 = vector.shape_cast %102 : vector<16x64xf32> to vector<2x8x64xf32>
    %104 = arith.addf %0, %103 : vector<2x8x64xf32>
    %c0_31 = arith.constant 0 : index
    %c0_32 = arith.constant 0 : index
    %105 = vector.load %arg4[%c0_31, %c0_32] : memref<1x64xf32, #tpu.memory_space<vmem>>, vector<1x64xf32>
    %106 = arith.mulf %104, %104 : vector<2x8x64xf32>
    %cst_33 = arith.constant dense<0.000000e+00> : vector<2x8xf32>
    %107 = vector.multi_reduction <add>, %106, %cst_33 [2] : vector<2x8x64xf32> to vector<2x8xf32>
    %108 = vector.shape_cast %107 : vector<2x8xf32> to vector<2x8x1xf32>
    %cst_34 = arith.constant 6.400000e+01 : f32
    %109 = vector.broadcast %cst_34 : f32 to vector<2x8x1xf32>
    %110 = arith.divf %108, %109 : vector<2x8x1xf32>
    %cst_35 = arith.constant 9.99999997E-7 : f32
    %111 = vector.broadcast %cst_35 : f32 to vector<2x8x1xf32>
    %112 = arith.addf %110, %111 : vector<2x8x1xf32>
    %113 = math.rsqrt %112 : vector<2x8x1xf32>
    %114 = vector.broadcast %113 : vector<2x8x1xf32> to vector<2x8x64xf32>
    %115 = arith.mulf %104, %114 : vector<2x8x64xf32>
    %116 = vector.shape_cast %105 : vector<1x64xf32> to vector<1x1x64xf32>
    %117 = vector.broadcast %116 : vector<1x1x64xf32> to vector<2x8x64xf32>
    %118 = arith.mulf %115, %117 : vector<2x8x64xf32>
    %119 = vector.shape_cast %118 : vector<2x8x64xf32> to vector<16x64xf32>
    %c0_36 = arith.constant 0 : index
    %c0_37 = arith.constant 0 : index
    %120 = vector.load %arg8[%c0_36, %c0_37] : memref<64x64xf32, #tpu.memory_space<vmem>>, vector<64x64xf32>
    %cst_38 = arith.constant dense<0.000000e+00> : vector<16x64xf32>
    %121 = tpu.matmul %119, %120, %cst_38 {dimension_numbers = #tpu.dot_dimension_numbers<[1], [0], [0], [1], [0, 0, 1, 1], [], []>} : vector<16x64xf32>, vector<64x64xf32>, vector<16x64xf32> -> vector<16x64xf32>
    %c0_39 = arith.constant 0 : index
    %c0_40 = arith.constant 0 : index
    %c0_41 = arith.constant 0 : index
    %122 = vector.load %arg1[%c0_39, %c0_40, %c0_41] : memref<2x8x64xf32, #tpu.memory_space<vmem>>, vector<2x8x64xf32>
    %123 = vector.shape_cast %122 : vector<2x8x64xf32> to vector<16x64xf32>
    %c0_42 = arith.constant 0 : index
    %c0_43 = arith.constant 0 : index
    %124 = vector.load %arg9[%c0_42, %c0_43] : memref<64x128xf32, #tpu.memory_space<vmem>>, vector<64x128xf32>
    %cst_44 = arith.constant dense<0.000000e+00> : vector<16x128xf32>
    %125 = tpu.matmul %123, %124, %cst_44 {dimension_numbers = #tpu.dot_dimension_numbers<[1], [0], [0], [1], [0, 0, 1, 1], [], []>} : vector<16x64xf32>, vector<64x128xf32>, vector<16x128xf32> -> vector<16x128xf32>
    %126 = vector.shape_cast %121 : vector<16x64xf32> to vector<2x8x64xf32>
    %127 = vector.shape_cast %125 : vector<16x128xf32> to vector<2x8x128xf32>
    %128 = vector.extract_strided_slice %126 {offsets = [0, 0, 0], sizes = [2, 8, 16], strides = [1, 1, 1]} : vector<2x8x64xf32> to vector<2x8x16xf32>
    %129 = vector.extract_strided_slice %127 {offsets = [0, 0, 0], sizes = [2, 8, 16], strides = [1, 1, 1]} : vector<2x8x128xf32> to vector<2x8x16xf32>
    %130 = vector.extract_strided_slice %127 {offsets = [0, 0, 64], sizes = [2, 8, 16], strides = [1, 1, 1]} : vector<2x8x128xf32> to vector<2x8x16xf32>
    "tpu.trace_start"() <{level = 10 : i32, message = "bqd,bkd->bqk"}> : () -> ()
    %cst_45 = arith.constant dense<0.000000e+00> : vector<2x8x8xf32>
    %131 = tpu.matmul %128, %129, %cst_45 {dimension_numbers = #tpu.dot_dimension_numbers<[2], [2], [1], [1], [0, 0, 0, 1, 1, 1], [0], [0]>} : vector<2x8x16xf32>, vector<2x8x16xf32>, vector<2x8x8xf32> -> vector<2x8x8xf32>
    "tpu.trace_stop"() : () -> ()
    %cst_46 = arith.constant dense<0xFF800000> : vector<2x8xf32>
    %132 = vector.multi_reduction <maximumf>, %131, %cst_46 [2] : vector<2x8x8xf32> to vector<2x8xf32>
    %133 = vector.shape_cast %132 : vector<2x8xf32> to vector<2x8x1xf32>
    %134 = vector.broadcast %133 : vector<2x8x1xf32> to vector<2x8x8xf32>
    %135 = arith.subf %131, %134 : vector<2x8x8xf32>
    %136 = math.exp %135 : vector<2x8x8xf32>
    %cst_47 = arith.constant dense<0.000000e+00> : vector<2x8xf32>
    %137 = vector.multi_reduction <add>, %136, %cst_47 [2] : vector<2x8x8xf32> to vector<2x8xf32>
    %138 = vector.shape_cast %137 : vector<2x8xf32> to vector<2x8x1xf32>
    %139 = vector.broadcast %138 : vector<2x8x1xf32> to vector<2x8x8xf32>
    %140 = arith.divf %136, %139 : vector<2x8x8xf32>
    "tpu.trace_start"() <{level = 10 : i32, message = "bqk,bkd->bqd"}> : () -> ()
    %cst_48 = arith.constant dense<0.000000e+00> : vector<2x8x16xf32>
    %141 = tpu.matmul %140, %130, %cst_48 {dimension_numbers = #tpu.dot_dimension_numbers<[2], [1], [1], [2], [0, 0, 0, 1, 1, 2], [0], [0]>} : vector<2x8x8xf32>, vector<2x8x16xf32>, vector<2x8x16xf32> -> vector<2x8x16xf32>
    "tpu.trace_stop"() : () -> ()
    %142 = vector.extract_strided_slice %126 {offsets = [0, 0, 16], sizes = [2, 8, 16], strides = [1, 1, 1]} : vector<2x8x64xf32> to vector<2x8x16xf32>
    %143 = vector.extract_strided_slice %127 {offsets = [0, 0, 16], sizes = [2, 8, 16], strides = [1, 1, 1]} : vector<2x8x128xf32> to vector<2x8x16xf32>
    %144 = vector.extract_strided_slice %127 {offsets = [0, 0, 80], sizes = [2, 8, 16], strides = [1, 1, 1]} : vector<2x8x128xf32> to vector<2x8x16xf32>
    "tpu.trace_start"() <{level = 10 : i32, message = "bqd,bkd->bqk"}> : () -> ()
    %cst_49 = arith.constant dense<0.000000e+00> : vector<2x8x8xf32>
    %145 = tpu.matmul %142, %143, %cst_49 {dimension_numbers = #tpu.dot_dimension_numbers<[2], [2], [1], [1], [0, 0, 0, 1, 1, 1], [0], [0]>} : vector<2x8x16xf32>, vector<2x8x16xf32>, vector<2x8x8xf32> -> vector<2x8x8xf32>
    "tpu.trace_stop"() : () -> ()
    %cst_50 = arith.constant dense<0xFF800000> : vector<2x8xf32>
    %146 = vector.multi_reduction <maximumf>, %145, %cst_50 [2] : vector<2x8x8xf32> to vector<2x8xf32>
    %147 = vector.shape_cast %146 : vector<2x8xf32> to vector<2x8x1xf32>
    %148 = vector.broadcast %147 : vector<2x8x1xf32> to vector<2x8x8xf32>
    %149 = arith.subf %145, %148 : vector<2x8x8xf32>
    %150 = math.exp %149 : vector<2x8x8xf32>
    %cst_51 = arith.constant dense<0.000000e+00> : vector<2x8xf32>
    %151 = vector.multi_reduction <add>, %150, %cst_51 [2] : vector<2x8x8xf32> to vector<2x8xf32>
    %152 = vector.shape_cast %151 : vector<2x8xf32> to vector<2x8x1xf32>
    %153 = vector.broadcast %152 : vector<2x8x1xf32> to vector<2x8x8xf32>
    %154 = arith.divf %150, %153 : vector<2x8x8xf32>
    "tpu.trace_start"() <{level = 10 : i32, message = "bqk,bkd->bqd"}> : () -> ()
    %cst_52 = arith.constant dense<0.000000e+00> : vector<2x8x16xf32>
    %155 = tpu.matmul %154, %144, %cst_52 {dimension_numbers = #tpu.dot_dimension_numbers<[2], [1], [1], [2], [0, 0, 0, 1, 1, 2], [0], [0]>} : vector<2x8x8xf32>, vector<2x8x16xf32>, vector<2x8x16xf32> -> vector<2x8x16xf32>
    "tpu.trace_stop"() : () -> ()
    %156 = vector.extract_strided_slice %126 {offsets = [0, 0, 32], sizes = [2, 8, 16], strides = [1, 1, 1]} : vector<2x8x64xf32> to vector<2x8x16xf32>
    %157 = vector.extract_strided_slice %127 {offsets = [0, 0, 32], sizes = [2, 8, 16], strides = [1, 1, 1]} : vector<2x8x128xf32> to vector<2x8x16xf32>
    %158 = vector.extract_strided_slice %127 {offsets = [0, 0, 96], sizes = [2, 8, 16], strides = [1, 1, 1]} : vector<2x8x128xf32> to vector<2x8x16xf32>
    "tpu.trace_start"() <{level = 10 : i32, message = "bqd,bkd->bqk"}> : () -> ()
    %cst_53 = arith.constant dense<0.000000e+00> : vector<2x8x8xf32>
    %159 = tpu.matmul %156, %157, %cst_53 {dimension_numbers = #tpu.dot_dimension_numbers<[2], [2], [1], [1], [0, 0, 0, 1, 1, 1], [0], [0]>} : vector<2x8x16xf32>, vector<2x8x16xf32>, vector<2x8x8xf32> -> vector<2x8x8xf32>
    "tpu.trace_stop"() : () -> ()
    %cst_54 = arith.constant dense<0xFF800000> : vector<2x8xf32>
    %160 = vector.multi_reduction <maximumf>, %159, %cst_54 [2] : vector<2x8x8xf32> to vector<2x8xf32>
    %161 = vector.shape_cast %160 : vector<2x8xf32> to vector<2x8x1xf32>
    %162 = vector.broadcast %161 : vector<2x8x1xf32> to vector<2x8x8xf32>
    %163 = arith.subf %159, %162 : vector<2x8x8xf32>
    %164 = math.exp %163 : vector<2x8x8xf32>
    %cst_55 = arith.constant dense<0.000000e+00> : vector<2x8xf32>
    %165 = vector.multi_reduction <add>, %164, %cst_55 [2] : vector<2x8x8xf32> to vector<2x8xf32>
    %166 = vector.shape_cast %165 : vector<2x8xf32> to vector<2x8x1xf32>
    %167 = vector.broadcast %166 : vector<2x8x1xf32> to vector<2x8x8xf32>
    %168 = arith.divf %164, %167 : vector<2x8x8xf32>
    "tpu.trace_start"() <{level = 10 : i32, message = "bqk,bkd->bqd"}> : () -> ()
    %cst_56 = arith.constant dense<0.000000e+00> : vector<2x8x16xf32>
    %169 = tpu.matmul %168, %158, %cst_56 {dimension_numbers = #tpu.dot_dimension_numbers<[2], [1], [1], [2], [0, 0, 0, 1, 1, 2], [0], [0]>} : vector<2x8x8xf32>, vector<2x8x16xf32>, vector<2x8x16xf32> -> vector<2x8x16xf32>
    "tpu.trace_stop"() : () -> ()
    %170 = vector.extract_strided_slice %126 {offsets = [0, 0, 48], sizes = [2, 8, 16], strides = [1, 1, 1]} : vector<2x8x64xf32> to vector<2x8x16xf32>
    %171 = vector.extract_strided_slice %127 {offsets = [0, 0, 48], sizes = [2, 8, 16], strides = [1, 1, 1]} : vector<2x8x128xf32> to vector<2x8x16xf32>
    %172 = vector.extract_strided_slice %127 {offsets = [0, 0, 112], sizes = [2, 8, 16], strides = [1, 1, 1]} : vector<2x8x128xf32> to vector<2x8x16xf32>
    "tpu.trace_start"() <{level = 10 : i32, message = "bqd,bkd->bqk"}> : () -> ()
    %cst_57 = arith.constant dense<0.000000e+00> : vector<2x8x8xf32>
    %173 = tpu.matmul %170, %171, %cst_57 {dimension_numbers = #tpu.dot_dimension_numbers<[2], [2], [1], [1], [0, 0, 0, 1, 1, 1], [0], [0]>} : vector<2x8x16xf32>, vector<2x8x16xf32>, vector<2x8x8xf32> -> vector<2x8x8xf32>
    "tpu.trace_stop"() : () -> ()
    %cst_58 = arith.constant dense<0xFF800000> : vector<2x8xf32>
    %174 = vector.multi_reduction <maximumf>, %173, %cst_58 [2] : vector<2x8x8xf32> to vector<2x8xf32>
    %175 = vector.shape_cast %174 : vector<2x8xf32> to vector<2x8x1xf32>
    %176 = vector.broadcast %175 : vector<2x8x1xf32> to vector<2x8x8xf32>
    %177 = arith.subf %173, %176 : vector<2x8x8xf32>
    %178 = math.exp %177 : vector<2x8x8xf32>
    %cst_59 = arith.constant dense<0.000000e+00> : vector<2x8xf32>
    %179 = vector.multi_reduction <add>, %178, %cst_59 [2] : vector<2x8x8xf32> to vector<2x8xf32>
    %180 = vector.shape_cast %179 : vector<2x8xf32> to vector<2x8x1xf32>
    %181 = vector.broadcast %180 : vector<2x8x1xf32> to vector<2x8x8xf32>
    %182 = arith.divf %178, %181 : vector<2x8x8xf32>
    "tpu.trace_start"() <{level = 10 : i32, message = "bqk,bkd->bqd"}> : () -> ()
    %cst_60 = arith.constant dense<0.000000e+00> : vector<2x8x16xf32>
    %183 = tpu.matmul %182, %172, %cst_60 {dimension_numbers = #tpu.dot_dimension_numbers<[2], [1], [1], [2], [0, 0, 0, 1, 1, 2], [0], [0]>} : vector<2x8x8xf32>, vector<2x8x16xf32>, vector<2x8x16xf32> -> vector<2x8x16xf32>
    "tpu.trace_stop"() : () -> ()
    %184 = tpu.concatenate %141, %155, %169, %183 in 2 : vector<2x8x16xf32>, vector<2x8x16xf32>, vector<2x8x16xf32>, vector<2x8x16xf32> -> vector<2x8x64xf32>
    %185 = vector.shape_cast %184 : vector<2x8x64xf32> to vector<16x64xf32>
    %c0_61 = arith.constant 0 : index
    %c0_62 = arith.constant 0 : index
    %186 = vector.load %arg10[%c0_61, %c0_62] : memref<64x64xf32, #tpu.memory_space<vmem>>, vector<64x64xf32>
    %cst_63 = arith.constant dense<0.000000e+00> : vector<16x64xf32>
    %187 = tpu.matmul %185, %186, %cst_63 {dimension_numbers = #tpu.dot_dimension_numbers<[1], [0], [0], [1], [0, 0, 1, 1], [], []>} : vector<16x64xf32>, vector<64x64xf32>, vector<16x64xf32> -> vector<16x64xf32>
    %188 = vector.shape_cast %187 : vector<16x64xf32> to vector<2x8x64xf32>
    %189 = arith.addf %104, %188 : vector<2x8x64xf32>
    %c0_64 = arith.constant 0 : index
    %c0_65 = arith.constant 0 : index
    %190 = vector.load %arg5[%c0_64, %c0_65] : memref<1x64xf32, #tpu.memory_space<vmem>>, vector<1x64xf32>
    %191 = arith.mulf %189, %189 : vector<2x8x64xf32>
    %cst_66 = arith.constant dense<0.000000e+00> : vector<2x8xf32>
    %192 = vector.multi_reduction <add>, %191, %cst_66 [2] : vector<2x8x64xf32> to vector<2x8xf32>
    %193 = vector.shape_cast %192 : vector<2x8xf32> to vector<2x8x1xf32>
    %cst_67 = arith.constant 6.400000e+01 : f32
    %194 = vector.broadcast %cst_67 : f32 to vector<2x8x1xf32>
    %195 = arith.divf %193, %194 : vector<2x8x1xf32>
    %cst_68 = arith.constant 9.99999997E-7 : f32
    %196 = vector.broadcast %cst_68 : f32 to vector<2x8x1xf32>
    %197 = arith.addf %195, %196 : vector<2x8x1xf32>
    %198 = math.rsqrt %197 : vector<2x8x1xf32>
    %199 = vector.broadcast %198 : vector<2x8x1xf32> to vector<2x8x64xf32>
    %200 = arith.mulf %189, %199 : vector<2x8x64xf32>
    %201 = vector.shape_cast %190 : vector<1x64xf32> to vector<1x1x64xf32>
    %202 = vector.broadcast %201 : vector<1x1x64xf32> to vector<2x8x64xf32>
    %203 = arith.mulf %200, %202 : vector<2x8x64xf32>
    %204 = vector.shape_cast %203 : vector<2x8x64xf32> to vector<16x64xf32>
    %c0_69 = arith.constant 0 : index
    %c0_70 = arith.constant 0 : index
    %205 = vector.load %arg11[%c0_69, %c0_70] : memref<64x128xf32, #tpu.memory_space<vmem>>, vector<64x128xf32>
    %cst_71 = arith.constant dense<0.000000e+00> : vector<16x128xf32>
    %206 = tpu.matmul %204, %205, %cst_71 {dimension_numbers = #tpu.dot_dimension_numbers<[1], [0], [0], [1], [0, 0, 1, 1], [], []>} : vector<16x64xf32>, vector<64x128xf32>, vector<16x128xf32> -> vector<16x128xf32>
    %cst_72 = arith.constant 0.000000e+00 : f32
    %207 = vector.broadcast %cst_72 : f32 to vector<16x128xf32>
    %208 = arith.maximumf %206, %207 : vector<16x128xf32>
    %c0_73 = arith.constant 0 : index
    %c0_74 = arith.constant 0 : index
    %209 = vector.load %arg12[%c0_73, %c0_74] : memref<128x64xf32, #tpu.memory_space<vmem>>, vector<128x64xf32>
    %cst_75 = arith.constant dense<0.000000e+00> : vector<16x64xf32>
    %210 = tpu.matmul %208, %209, %cst_75 {dimension_numbers = #tpu.dot_dimension_numbers<[1], [0], [0], [1], [0, 0, 1, 1], [], []>} : vector<16x128xf32>, vector<128x64xf32>, vector<16x64xf32> -> vector<16x64xf32>
    %211 = vector.shape_cast %210 : vector<16x64xf32> to vector<2x8x64xf32>
    %212 = arith.addf %189, %211 : vector<2x8x64xf32>
    %c0_76 = arith.constant 0 : index
    %c0_77 = arith.constant 0 : index
    %c0_78 = arith.constant 0 : index
    %213 = vector.load %arg13[%c0_76, %c0_77, %c0_78] : memref<2x8x64xf32, #tpu.memory_space<vmem>>, vector<2x8x64xf32>
    tpu.vector_store %arg13[%c0_76, %c0_77, %c0_78], %212 {strides = array<i32>} : memref<2x8x64xf32, #tpu.memory_space<vmem>>, vector<2x8x64xf32>,
    return
  }
}

</mosaic_0001>

<llo_original>
// kernel: tpu_custom_call.1
$region0: #{tpu_custom_call.1}
  #allocation0 [shape = 'u32[]', space=smem, size = 0x4, offset = 0x4, fixed_abs, tag = 'smem constant byte address 0x4 - core index']
  #allocation1 [shape = 'u32[72,128]{1,0:T(1,128)}', space=vmem, size = 0x9000, scoped, tag = 'internal scratch']
  %s0 = inlined_call_operand.hbm [shape: f32[2,8,64], index: 0, kind: input, shape index: {}]
  %s1 = inlined_call_operand.hbm [shape: f32[2,8,64], index: 1, kind: input, shape index: {}]
  %s2 = inlined_call_operand.hbm [shape: f32[4,8,8], index: 2, kind: input, shape index: {}]
  %s3 = inlined_call_operand.vmem [shape: f32[1,64], index: 3, kind: input, shape index: {}]
  %s4 = inlined_call_operand.vmem [shape: f32[1,64], index: 4, kind: input, shape index: {}]
  %s5 = inlined_call_operand.vmem [shape: f32[1,64], index: 5, kind: input, shape index: {}]
  %s6 = inlined_call_operand.vmem [shape: f32[64,192], index: 6, kind: input, shape index: {}]
  %s7 = inlined_call_operand.vmem [shape: f32[64,64], index: 7, kind: input, shape index: {}]
  %s8 = inlined_call_operand.hbm [shape: f32[64,64], index: 8, kind: input, shape index: {}]
  %s9 = inlined_call_operand.hbm [shape: f32[64,128], index: 9, kind: input, shape index: {}]
  %s10 = inlined_call_operand.hbm [shape: f32[64,64], index: 10, kind: input, shape index: {}]
  %s11 = inlined_call_operand.hbm [shape: f32[64,128], index: 11, kind: input, shape index: {}]
  %s12 = inlined_call_operand.vmem [shape: f32[128,64], index: 12, kind: input, shape index: {}]
  %s13 = inlined_call_operand.hbm [shape: f32[2,8,64], index: 13, kind: output, shape index: {}]
  %s14 = sld [smem:[#allocation0]]
  $region90: #{tpu_custom_call.1} parent=0
    _
  %s16 = ssub.s32 1, %s14
  %s17 = scalar_select 0, %s16, %s14
  $region1: #{tpu_custom_call.1} parent=0
    #allocation2 [shape = 'u8[8192]{0}', space=vmem, size = 0x2000, scoped, tag = 'input window, operand 0, single buffered']
    #allocation3 [shape = 's32[1]{0}', space=sflag, size = 0x4, scoped, tag = 'scoped memory for tpu_custom_call.1']
    #allocation4 [shape = 's32[1]{0}', space=sflag, size = 0x4, scoped, tag = 'scoped memory for tpu_custom_call.1']
    #allocation5 [shape = 'u8[8192]{0}', space=vmem, size = 0x2000, scoped, tag = 'input window, operand 1, single buffered']
    #allocation6 [shape = 's32[1]{0}', space=sflag, size = 0x4, scoped, tag = 'scoped memory for tpu_custom_call.1']
    #allocation7 [shape = 'u8[16384]{0}', space=vmem, size = 0x4000, scoped, tag = 'input window, operand 2, single buffered']
    #allocation8 [shape = 'u8[32768]{0}', space=vmem, size = 0x8000, scoped, tag = 'input window, operand 8, single buffered']
    #allocation9 [shape = 's32[1]{0}', space=sflag, size = 0x4, scoped, tag = 'scoped memory for tpu_custom_call.1']
    #allocation10 [shape = 'u8[32768]{0}', space=vmem, size = 0x8000, scoped, tag = 'input window, operand 9, single buffered']
    #allocation11 [shape = 'u8[32768]{0}', space=vmem, size = 0x8000, scoped, tag = 'input window, operand 10, single buffered']
    #allocation12 [shape = 's32[1]{0}', space=sflag, size = 0x4, scoped, tag = 'scoped memory for tpu_custom_call.1']
    #allocation13 [shape = 'u8[32768]{0}', space=vmem, size = 0x8000, scoped, tag = 'input window, operand 11, single buffered']
    #allocation14 [shape = 'u8[8192]{0}', space=vmem, size = 0x2000, scoped, tag = 'output window, operand 0, single buffered']
    %18 = vsyncpa [#allocation3], 0
    %19 = vsyncpa [#allocation6], 0
    %20 = vsyncpa [#allocation9], 0
    %21 = vsyncpa [#allocation12], 0
    %22 = vsyncpa [#allocation4], 0
    // Predicated region
    $region2: #{tpu_custom_call.1} parent=1 // pred_check
      _
    $region3: #{tpu_custom_call.1} parent=1 // pred_check_branch
      %24 = sbr.rel (0) target = $region5
    $region4: #{tpu_custom_call.1} parent=1 // pred_region
      %26 = vsyncadd [#allocation3], 0
      %s27 = sshll.u32 %s0, 4
      %s28 = int_to_ptr.hbm [resolvable:$true] %s27
      %s29 = sshll.u32 [#allocation2], 4
      %s30 = int_to_ptr.vmem [resolvable:$true] %s29
      %35 = dma.hbm_to_vmem [thread:$0]  %s28, 256, %s30, [#allocation3], 128, 128, 8
    $region5: #{tpu_custom_call.1} parent=1 // pred_fallthru
      _
    // Predicated region
    $region6: #{tpu_custom_call.1} parent=1 // pred_check
      _
    $region7: #{tpu_custom_call.1} parent=1 // pred_check_branch
      %37 = sbr.rel (0) target = $region9
    $region8: #{tpu_custom_call.1} parent=1 // pred_region
      %39 = vsyncadd [#allocation6], 0
      %s40 = sshll.u32 %s1, 4
      %s41 = int_to_ptr.hbm [resolvable:$true] %s40
      %s42 = sshll.u32 [#allocation5], 4
      %s43 = int_to_ptr.vmem [resolvable:$true] %s42
      %48 = dma.hbm_to_vmem [thread:$0]  %s41, 256, %s43, [#allocation6], 128, 128, 8
    $region9: #{tpu_custom_call.1} parent=1 // pred_fallthru
      _
    // Predicated region
    $region10: #{tpu_custom_call.1} parent=1 // pred_check
      _
    $region11: #{tpu_custom_call.1} parent=1 // pred_check_branch
      %50 = sbr.rel (0) target = $region13
    $region12: #{tpu_custom_call.1} parent=1 // pred_region
      %52 = vsyncadd [#allocation6], 0
      %s53 = sshll.u32 %s2, 4
      %s54 = int_to_ptr.hbm [resolvable:$true] %s53
      %s55 = sshll.u32 [#allocation7], 4
      %s56 = int_to_ptr.vmem [resolvable:$true] %s55
      %61 = dma.hbm_to_vmem [thread:$0]  %s54, 512, %s56, [#allocation6], 128, 128, 8
    $region13: #{tpu_custom_call.1} parent=1 // pred_fallthru
      _
    // Predicated region
    $region14: #{tpu_custom_call.1} parent=1 // pred_check
      _
    $region15: #{tpu_custom_call.1} parent=1 // pred_check_branch
      %63 = sbr.rel (0) target = $region17
    $region16: #{tpu_custom_call.1} parent=1 // pred_region
      _
    $region17: #{tpu_custom_call.1} parent=1 // pred_fallthru
      _
    // Predicated region
    $region18: #{tpu_custom_call.1} parent=1 // pred_check
      _
    $region19: #{tpu_custom_call.1} parent=1 // pred_check_branch
      %65 = sbr.rel (0) target = $region21
    $region20: #{tpu_custom_call.1} parent=1 // pred_region
      _
    $region21: #{tpu_custom_call.1} parent=1 // pred_fallthru
      _
    // Predicated region
    $region22: #{tpu_custom_call.1} parent=1 // pred_check
      _
    $region23: #{tpu_custom_call.1} parent=1 // pred_check_branch
      %67 = sbr.rel (0) target = $region25
    $region24: #{tpu_custom_call.1} parent=1 // pred_region
      _
    $region25: #{tpu_custom_call.1} parent=1 // pred_fallthru
      _
    // Predicated region
    $region26: #{tpu_custom_call.1} parent=1 // pred_check
      _
    $region27: #{tpu_custom_call.1} parent=1 // pred_check_branch
      %69 = sbr.rel (0) target = $region29
    $region28: #{tpu_custom_call.1} parent=1 // pred_region
      _
    $region29: #{tpu_custom_call.1} parent=1 // pred_fallthru
      _
    // Predicated region
    $region30: #{tpu_custom_call.1} parent=1 // pred_check
      _
    $region31: #{tpu_custom_call.1} parent=1 // pred_check_branch
      %71 = sbr.rel (0) target = $region33
    $region32: #{tpu_custom_call.1} parent=1 // pred_region
      _
    $region33: #{tpu_custom_call.1} parent=1 // pred_fallthru
      _
    // Predicated region
    $region34: #{tpu_custom_call.1} parent=1 // pred_check
      _
    $region35: #{tpu_custom_call.1} parent=1 // pred_check_branch
      %73 = sbr.rel (0) target = $region37
    $region36: #{tpu_custom_call.1} parent=1 // pred_region
      %75 = vsyncadd [#allocation9], 0
      %s76 = sshll.u32 %s8, 4
      %s77 = int_to_ptr.hbm [resolvable:$true] %s76
      %s78 = sshll.u32 [#allocation8], 4
      %s79 = int_to_ptr.vmem [resolvable:$true] %s78
      %84 = dma.hbm_to_vmem [thread:$0]  %s77, 1024, %s79, [#allocation9], 128, 128, 8
    $region37: #{tpu_custom_call.1} parent=1 // pred_fallthru
      _
    // Predicated region
    $region38: #{tpu_custom_call.1} parent=1 // pred_check
      _
    $region39: #{tpu_custom_call.1} parent=1 // pred_check_branch
      %86 = sbr.rel (0) target = $region41
    $region40: #{tpu_custom_call.1} parent=1 // pred_region
      %88 = vsyncadd [#allocation9], 0
      %s89 = sshll.u32 %s9, 4
      %s90 = int_to_ptr.hbm [resolvable:$true] %s89
      %s91 = sshll.u32 [#allocation10], 4
      %s92 = int_to_ptr.vmem [resolvable:$true] %s91
      %97 = dma.hbm_to_vmem [thread:$0]  %s90, 1024, %s92, [#allocation9], 128, 128, 8
    $region41: #{tpu_custom_call.1} parent=1 // pred_fallthru
      _
    // Predicated region
    $region42: #{tpu_custom_call.1} parent=1 // pred_check
      _
    $region43: #{tpu_custom_call.1} parent=1 // pred_check_branch
      %99 = sbr.rel (0) target = $region45
    $region44: #{tpu_custom_call.1} parent=1 // pred_region
      %101 = vsyncadd [#allocation12], 0
      %s102 = sshll.u32 %s10, 4
      %s103 = int_to_ptr.hbm [resolvable:$true] %s102
      %s104 = sshll.u32 [#allocation11], 4
      %s105 = int_to_ptr.vmem [resolvable:$true] %s104
      %110 = dma.hbm_to_vmem [thread:$0]  %s103, 1024, %s105, [#allocation12], 128, 128, 8
    $region45: #{tpu_custom_call.1} parent=1 // pred_fallthru
      _
    // Predicated region
    $region46: #{tpu_custom_call.1} parent=1 // pred_check
      _
    $region47: #{tpu_custom_call.1} parent=1 // pred_check_branch
      %112 = sbr.rel (0) target = $region49
    $region48: #{tpu_custom_call.1} parent=1 // pred_region
      %114 = vsyncadd [#allocation12], 0
      %s115 = sshll.u32 %s11, 4
      %s116 = int_to_ptr.hbm [resolvable:$true] %s115
      %s117 = sshll.u32 [#allocation13], 4
      %s118 = int_to_ptr.vmem [resolvable:$true] %s117
      %123 = dma.hbm_to_vmem [thread:$0]  %s116, 1024, %s118, [#allocation12], 128, 128, 8
    $region49: #{tpu_custom_call.1} parent=1 // pred_fallthru
      _
    // Predicated region
    $region50: #{tpu_custom_call.1} parent=1 // pred_check
      _
    $region51: #{tpu_custom_call.1} parent=1 // pred_check_branch
      %125 = sbr.rel (0) target = $region53
    $region52: #{tpu_custom_call.1} parent=1 // pred_region
      _
    $region53: #{tpu_custom_call.1} parent=1 // pred_fallthru
      _
    // Predicated region
    $region54: #{tpu_custom_call.1} parent=1 // pred_check
      _
    $region55: #{tpu_custom_call.1} parent=1 // pred_check_branch
      %127 = sbr.rel (0) target = $region57
    $region56: #{tpu_custom_call.1} parent=1 // pred_region
      %129 = dma.done [#allocation3], 256
    $region57: #{tpu_custom_call.1} parent=1 // pred_fallthru
      _
    // Predicated region
    $region58: #{tpu_custom_call.1} parent=1 // pred_check
      _
    $region59: #{tpu_custom_call.1} parent=1 // pred_check_branch
      %131 = sbr.rel (0) target = $region61
    $region60: #{tpu_custom_call.1} parent=1 // pred_region
      %133 = dma.done [#allocation6], 256
    $region61: #{tpu_custom_call.1} parent=1 // pred_fallthru
      _
    // Predicated region
    $region62: #{tpu_custom_call.1} parent=1 // pred_check
      _
    $region63: #{tpu_custom_call.1} parent=1 // pred_check_branch
      %135 = sbr.rel (0) target = $region65
    $region64: #{tpu_custom_call.1} parent=1 // pred_region
      %137 = dma.done [#allocation6], 512
    $region65: #{tpu_custom_call.1} parent=1 // pred_fallthru
      _
    // Predicated region
    $region66: #{tpu_custom_call.1} parent=1 // pred_check
      _
    $region67: #{tpu_custom_call.1} parent=1 // pred_check_branch
      %139 = sbr.rel (0) target = $region69
    $region68: #{tpu_custom_call.1} parent=1 // pred_region
      %141 = dma.done [#allocation9], 1024
    $region69: #{tpu_custom_call.1} parent=1 // pred_fallthru
      _
    // Predicated region
    $region70: #{tpu_custom_call.1} parent=1 // pred_check
      _
    $region71: #{tpu_custom_call.1} parent=1 // pred_check_branch
      %143 = sbr.rel (0) target = $region73
    $region72: #{tpu_custom_call.1} parent=1 // pred_region
      %145 = dma.done [#allocation9], 1024
    $region73: #{tpu_custom_call.1} parent=1 // pred_fallthru
      _
    // Predicated region
    $region74: #{tpu_custom_call.1} parent=1 // pred_check
      _
    $region75: #{tpu_custom_call.1} parent=1 // pred_check_branch
      %147 = sbr.rel (0) target = $region77
    $region76: #{tpu_custom_call.1} parent=1 // pred_region
      %149 = dma.done [#allocation12], 1024
    $region77: #{tpu_custom_call.1} parent=1 // pred_fallthru
      _
    // Predicated region
    $region78: #{tpu_custom_call.1} parent=1 // pred_check
      _
    $region79: #{tpu_custom_call.1} parent=1 // pred_check_branch
      %151 = sbr.rel (0) target = $region81
    $region80: #{tpu_custom_call.1} parent=1 // pred_region
      %153 = dma.done [#allocation12], 1024
    $region81: #{tpu_custom_call.1} parent=1 // pred_fallthru
      _
    %v154 = vld [vmem:[#allocation2] sm:$0xff]
    %v155 = vld [vmem:[#allocation2 + $0x8] sm:$0xff]
    %v156 = vld [vmem:[%s3] sm:$0x1]
    %v157 = vmul.f32 %v154, %v154
    %v158 = vmul.f32 %v155, %v155
    %vm159 = vcmask 523264
    %v160 = vsel %vm159, %v157, 0.0
    %161 = vadd.xlane.f32.xlu0 %v160
    %v162 = vpop.xlane.xlu0 %161
    %v163 = vsel %vm159, %v158, 0.0
    %164 = vadd.xlane.f32.xlu0 %v163
    %v165 = vpop.xlane.xlu0 %164
    %v166 = vrcp.pop 64.0
    %v167 = vmul.f32 64.0, %v166
    %v168 = vsub.f32 1.0, %v167
    %v169 = vmul.f32 %v166, %v168
    %v170 = vadd.f32 %v166, %v169
    %vm171 = vweird.f32 %v166
    %v172 = vsel %vm171, %v166, %v170
    %v173 = vmul.f32 %v162, %v172
    %v174 = vmul.f32 %v165, %v172
    %v175 = vadd.f32 %v173, 1e-06
    %v176 = vadd.f32 %v174, 1e-06
    %v177 = vrsqrt.pop %v175
    %v178 = vmul.f32 %v177, %v175
    %v179 = vmul.f32 %v178, %v177
    %v180 = vmul.f32 0.5, %v179
    %v181 = vsub.f32 1.5, %v180
    %v182 = vmul.f32 %v177, %v181
    %vm183 = vweird.f32 %v175
    %vm184 = vweird.f32 %v177
    %vm185 = vmor %vm183, %vm184
    %v186 = vsel %vm185, %v177, %v182
    %v187 = vrsqrt.pop %v176
    %v188 = vmul.f32 %v187, %v176
    %v189 = vmul.f32 %v188, %v187
    %v190 = vmul.f32 0.5, %v189
    %v191 = vsub.f32 1.5, %v190
    %v192 = vmul.f32 %v187, %v191
    %vm193 = vweird.f32 %v176
    %vm194 = vweird.f32 %v187
    %vm195 = vmor %vm193, %vm194
    %v196 = vsel %vm195, %v187, %v192
    %v197 = vmul.f32 %v154, %v186
    %v198 = vmul.f32 %v155, %v196
    %v200 = vperm.slane %v156, 0
    %v202 = vmul.f32 %v197, %v200
    %v203 = vmul.f32 %v198, %v200
    %v204 = vld [vmem:[%s6] sm:$0xff]
    %v205 = vld [vmem:[%s6 + $0x8] sm:$0xff]
    %v206 = vld [vmem:[%s6 + $0x10] sm:$0xff]
    %v207 = vld [vmem:[%s6 + $0x18] sm:$0xff]
    %v208 = vld [vmem:[%s6 + $0x20] sm:$0xff]
    %v209 = vld [vmem:[%s6 + $0x28] sm:$0xff]
    %v210 = vld [vmem:[%s6 + $0x30] sm:$0xff]
    %v211 = vld [vmem:[%s6 + $0x38] sm:$0xff]
    %v212 = vld [vmem:[%s6 + $0x40] sm:$0xff]
    %v213 = vld [vmem:[%s6 + $0x48] sm:$0xff]
    %v214 = vld [vmem:[%s6 + $0x50] sm:$0xff]
    %v215 = vld [vmem:[%s6 + $0x58] sm:$0xff]
    %v216 = vld [vmem:[%s6 + $0x60] sm:$0xff]
    %v217 = vld [vmem:[%s6 + $0x68] sm:$0xff]
    %v218 = vld [vmem:[%s6 + $0x70] sm:$0xff]
    %v219 = vld [vmem:[%s6 + $0x78] sm:$0xff]
    %v221 = vsel %vm159, %v202, 0
    %v224 = vsel %vm159, %v203, 0
    %226 = vmatpush.msra.mxu0 0.0
    %227 = vmatpush.msra.mxu0 0.0
    %228 = vmatpush.msra.mxu0 0.0
    %229 = vmatpush.msra.mxu0 0.0
    %230 = vmatpush.msra.mxu0 0.0
    %231 = vmatpush.msra.mxu0 0.0
    %232 = vmatpush.msra.mxu0 0.0
    %233 = vmatpush.msra.mxu0 0.0
    %234 = vmatpush.msra.mxu0 %v218
    %235 = vmatpush.msra.mxu0 %v216
    %236 = vmatpush.msra.mxu0 %v214
    %237 = vmatpush.msra.mxu0 %v212
    %238 = vmatpush.msra.mxu0 %v210
    %239 = vmatpush.msra.mxu0 %v208
    %240 = vmatpush.msra.mxu0 %v206
    %241 = vmatpush.msra.mxu0 %v204
    %242 = vmatmul.f32.gmra.mxu0 %v221
    %v243 = vpop.f32.mrf.mxu0
    %v244 = vadd.f32 0.0, %v243
    %245 = vmatmul.f32.gmra.mxu0 %v224
    %v246 = vpop.f32.mrf.mxu0
    %v247 = vadd.f32 0.0, %v246
    %248 = vdwg.mxu0
    %249 = vmatpush.msra.mxu0 0.0
    %250 = vmatpush.msra.mxu0 0.0
    %251 = vmatpush.msra.mxu0 0.0
    %252 = vmatpush.msra.mxu0 0.0
    %253 = vmatpush.msra.mxu0 0.0
    %254 = vmatpush.msra.mxu0 0.0
    %255 = vmatpush.msra.mxu0 0.0
    %256 = vmatpush.msra.mxu0 0.0
    %257 = vmatpush.msra.mxu0 %v219
    %258 = vmatpush.msra.mxu0 %v217
    %259 = vmatpush.msra.mxu0 %v215
    %260 = vmatpush.msra.mxu0 %v213
    %261 = vmatpush.msra.mxu0 %v211
    %262 = vmatpush.msra.mxu0 %v209
    %263 = vmatpush.msra.mxu0 %v207
    %264 = vmatpush.msra.mxu0 %v205
    %265 = vmatmul.f32.gmra.mxu0 %v221
    %v266 = vpop.f32.mrf.mxu0
    %v267 = vadd.f32 0.0, %v266
    %268 = vmatmul.f32.gmra.mxu0 %v224
    %v269 = vpop.f32.mrf.mxu0
    %v270 = vadd.f32 0.0, %v269
    %271 = vdwg.mxu0
    %v272 = vld [vmem:[#allocation7] sm:$0xff]
    %v273 = vld [vmem:[#allocation7 + $0x8] sm:$0xff]
    %v274 = vld [vmem:[#allocation7 + $0x10] sm:$0xff]
    %v275 = vld [vmem:[#allocation7 + $0x18] sm:$0xff]
    %277 = vrot.lane.b32.xlu0 %v244, 64
    %v278 = vpop.permute.xlu0 %277
    %vm279 = vcmask 130048
    %v280 = vsel %vm279, %v244, 0
    %v282 = vsel %vm279, %v278, 0
    %284 = vmatpush.xpose.msra.mxu0 0.0
    %285 = vmatpush.xpose.msra.mxu0 0.0
    %286 = vmatpush.xpose.msra.mxu0 0.0
    %287 = vmatpush.xpose.msra.mxu0 0.0
    %288 = vmatpush.xpose.msra.mxu0 0.0
    %289 = vmatpush.xpose.msra.mxu0 0.0
    %290 = vmatpush.xpose.msra.mxu0 0.0
    %291 = vmatpush.xpose.msra.mxu0 0.0
    %292 = vmatpush.xpose.msra.mxu0 0.0
    %293 = vmatpush.xpose.msra.mxu0 0.0
    %294 = vmatpush.xpose.msra.mxu0 0.0
    %295 = vmatpush.xpose.msra.mxu0 0.0
    %296 = vmatpush.xpose.msra.mxu0 0.0
    %297 = vmatpush.xpose.msra.mxu0 0.0
    %298 = vmatpush.xpose.msra.mxu0 0.0
    %299 = vmatpush.xpose.msra.mxu0 %v282
    %300 = vmatmul.f32.gmra.mxu0 %v280
    %v301 = vpop.f32.mrf.mxu0
    %v302 = vadd.f32 %v272, %v301
    %303 = vdwg.mxu0
    %305 = vrot.lane.b32.xlu0 %v247, 64
    %v306 = vpop.permute.xlu0 %305
    %v307 = vsel %vm279, %v247, 0
    %v309 = vsel %vm279, %v306, 0
    %311 = vmatpush.xpose.msra.mxu0 0.0
    %312 = vmatpush.xpose.msra.mxu0 0.0
    %313 = vmatpush.xpose.msra.mxu0 0.0
    %314 = vmatpush.xpose.msra.mxu0 0.0
    %315 = vmatpush.xpose.msra.mxu0 0.0
    %316 = vmatpush.xpose.msra.mxu0 0.0
    %317 = vmatpush.xpose.msra.mxu0 0.0
    %318 = vmatpush.xpose.msra.mxu0 0.0
    %319 = vmatpush.xpose.msra.mxu0 0.0
    %320 = vmatpush.xpose.msra.mxu0 0.0
    %321 = vmatpush.xpose.msra.mxu0 0.0
    %322 = vmatpush.xpose.msra.mxu0 0.0
    %323 = vmatpush.xpose.msra.mxu0 0.0
    %324 = vmatpush.xpose.msra.mxu0 0.0
    %325 = vmatpush.xpose.msra.mxu0 0.0
    %326 = vmatpush.xpose.msra.mxu0 %v309
    %327 = vmatmul.f32.gmra.mxu0 %v307
    %v328 = vpop.f32.mrf.mxu0
    %v329 = vadd.f32 %v272, %v328
    %330 = vdwg.mxu0
    %vm331 = vcmask 64512
    %v332 = vsel %vm331, %v302, -inf
    %333 = vmax.xlane.f32.xlu0 %v332
    %v334 = vpop.xlane.xlu0 %333
    %v335 = vsel %vm331, %v329, -inf
    %336 = vmax.xlane.f32.xlu0 %v335
    %v337 = vpop.xlane.xlu0 %336
    %v338 = vsub.f32 %v302, %v334
    %v339 = vsub.f32 %v329, %v337
    %v340 = vmul.f32 %v338, 1.442695
    %v341 = vpow.pop %v340
    %v342 = vmul.f32 %v339, 1.442695
    %v343 = vpow.pop %v342
    %v344 = vsel %vm331, %v341, 0.0
    %345 = vadd.xlane.f32.xlu0 %v344
    %v346 = vpop.xlane.xlu0 %345
    %v347 = vsel %vm331, %v343, 0.0
    %348 = vadd.xlane.f32.xlu0 %v347
    %v349 = vpop.xlane.xlu0 %348
    %v350 = vrcp.pop %v346
    %v351 = vmul.f32 %v346, %v350
    %v352 = vsub.f32 1.0, %v351
    %v353 = vmul.f32 %v350, %v352
    %v354 = vadd.f32 %v350, %v353
    %vm355 = vweird.f32 %v346
    %vm356 = vweird.f32 %v350
    %vm357 = vmor %vm355, %vm356
    %v358 = vsel %vm357, %v350, %v354
    %v359 = vand.u32 2147483647, %v346
    %vm360 = vcmp.eq.f32.partialorder %v359, 8.507059e+37
    %v361 = vand.u32 %v346, 2147483648
    %v362 = vor.u32 1.1754944e-38, %v361
    %v363 = vsel %vm360, %v362, %v358
    %v364 = vmul.f32 %v341, %v363
    %v365 = vrcp.pop %v349
    %v366 = vmul.f32 %v349, %v365
    %v367 = vsub.f32 1.0, %v366
    %v368 = vmul.f32 %v365, %v367
    %v369 = vadd.f32 %v365, %v368
    %vm370 = vweird.f32 %v349
    %vm371 = vweird.f32 %v365
    %vm372 = vmor %vm370, %vm371
    %v373 = vsel %vm372, %v365, %v369
    %v374 = vand.u32 2147483647, %v349
    %vm375 = vcmp.eq.f32.partialorder %v374, 8.507059e+37
    %v376 = vand.u32 %v349, 2147483648
    %v377 = vor.u32 1.1754944e-38, %v376
    %v378 = vsel %vm375, %v377, %v373
    %v379 = vmul.f32 %v343, %v378
    %v381 = vsel %vm331, %v364, 0
    %383 = vmatpush.msra.mxu0 0.0
    %384 = vmatpush.msra.mxu0 0.0
    %385 = vmatpush.msra.mxu0 0.0
    %386 = vmatpush.msra.mxu0 0.0
    %387 = vmatpush.msra.mxu0 0.0
    %388 = vmatpush.msra.mxu0 0.0
    %389 = vmatpush.msra.mxu0 0.0
    %390 = vmatpush.msra.mxu0 0.0
    %391 = vmatpush.msra.mxu0 0.0
    %392 = vmatpush.msra.mxu0 0.0
    %393 = vmatpush.msra.mxu0 0.0
    %394 = vmatpush.msra.mxu0 0.0
    %395 = vmatpush.msra.mxu0 0.0
    %396 = vmatpush.msra.mxu0 0.0
    %397 = vmatpush.msra.mxu0 0.0
    %398 = vmatpush.msra.mxu0 %v267
    %399 = vmatmul.f32.gmra.mxu0 %v381
    %v400 = vpop.f32.mrf.mxu0
    %v401 = vadd.f32 0.0, %v400
    %402 = vdwg.mxu0
    %v404 = vsel %vm331, %v379, 0
    %406 = vmatpush.msra.mxu0 0.0
    %407 = vmatpush.msra.mxu0 0.0
    %408 = vmatpush.msra.mxu0 0.0
    %409 = vmatpush.msra.mxu0 0.0
    %410 = vmatpush.msra.mxu0 0.0
    %411 = vmatpush.msra.mxu0 0.0
    %412 = vmatpush.msra.mxu0 0.0
    %413 = vmatpush.msra.mxu0 0.0
    %414 = vmatpush.msra.mxu0 0.0
    %415 = vmatpush.msra.mxu0 0.0
    %416 = vmatpush.msra.mxu0 0.0
    %417 = vmatpush.msra.mxu0 0.0
    %418 = vmatpush.msra.mxu0 0.0
    %419 = vmatpush.msra.mxu0 0.0
    %420 = vmatpush.msra.mxu0 0.0
    %421 = vmatpush.msra.mxu0 %v270
    %422 = vmatmul.f32.gmra.mxu0 %v404
    %v423 = vpop.f32.mrf.mxu0
    %v424 = vadd.f32 0.0, %v423
    %425 = vdwg.mxu0
    %426 = vrot.lane.b32.xlu0 %v244, 112
    %v427 = vpop.permute.xlu0 %426
    %428 = vrot.lane.b32.xlu0 %v244, 48
    %v429 = vpop.permute.xlu0 %428
    %v430 = vsel %vm279, %v427, 0
    %v432 = vsel %vm279, %v429, 0
    %434 = vmatpush.xpose.msra.mxu0 0.0
    %435 = vmatpush.xpose.msra.mxu0 0.0
    %436 = vmatpush.xpose.msra.mxu0 0.0
    %437 = vmatpush.xpose.msra.mxu0 0.0
    %438 = vmatpush.xpose.msra.mxu0 0.0
    %439 = vmatpush.xpose.msra.mxu0 0.0
    %440 = vmatpush.xpose.msra.mxu0 0.0
    %441 = vmatpush.xpose.msra.mxu0 0.0
    %442 = vmatpush.xpose.msra.mxu0 0.0
    %443 = vmatpush.xpose.msra.mxu0 0.0
    %444 = vmatpush.xpose.msra.mxu0 0.0
    %445 = vmatpush.xpose.msra.mxu0 0.0
    %446 = vmatpush.xpose.msra.mxu0 0.0
    %447 = vmatpush.xpose.msra.mxu0 0.0
    %448 = vmatpush.xpose.msra.mxu0 0.0
    %449 = vmatpush.xpose.msra.mxu0 %v432
    %450 = vmatmul.f32.gmra.mxu0 %v430
    %v451 = vpop.f32.mrf.mxu0
    %v452 = vadd.f32 %v273, %v451
    %453 = vdwg.mxu0
    %454 = vrot.lane.b32.xlu0 %v247, 112
    %v455 = vpop.permute.xlu0 %454
    %456 = vrot.lane.b32.xlu0 %v247, 48
    %v457 = vpop.permute.xlu0 %456
    %v458 = vsel %vm279, %v455, 0
    %v460 = vsel %vm279, %v457, 0
    %462 = vmatpush.xpose.msra.mxu0 0.0
    %463 = vmatpush.xpose.msra.mxu0 0.0
    %464 = vmatpush.xpose.msra.mxu0 0.0
    %465 = vmatpush.xpose.msra.mxu0 0.0
    %466 = vmatpush.xpose.msra.mxu0 0.0
    %467 = vmatpush.xpose.msra.mxu0 0.0
    %468 = vmatpush.xpose.msra.mxu0 0.0
    %469 = vmatpush.xpose.msra.mxu0 0.0
    %470 = vmatpush.xpose.msra.mxu0 0.0
    %471 = vmatpush.xpose.msra.mxu0 0.0
    %472 = vmatpush.xpose.msra.mxu0 0.0
    %473 = vmatpush.xpose.msra.mxu0 0.0
    %474 = vmatpush.xpose.msra.mxu0 0.0
    %475 = vmatpush.xpose.msra.mxu0 0.0
    %476 = vmatpush.xpose.msra.mxu0 0.0
    %477 = vmatpush.xpose.msra.mxu0 %v460
    %478 = vmatmul.f32.gmra.mxu0 %v458
    %v479 = vpop.f32.mrf.mxu0
    %v480 = vadd.f32 %v273, %v479
    %481 = vdwg.mxu0
    %v482 = vsel %vm331, %v452, -inf
    %483 = vmax.xlane.f32.xlu0 %v482
    %v484 = vpop.xlane.xlu0 %483
    %v485 = vsel %vm331, %v480, -inf
    %486 = vmax.xlane.f32.xlu0 %v485
    %v487 = vpop.xlane.xlu0 %486
    %v488 = vsub.f32 %v452, %v484
    %v489 = vsub.f32 %v480, %v487
    %v490 = vmul.f32 %v488, 1.442695
    %v491 = vpow.pop %v490
    %v492 = vmul.f32 %v489, 1.442695
    %v493 = vpow.pop %v492
    %v494 = vsel %vm331, %v491, 0.0
    %495 = vadd.xlane.f32.xlu0 %v494
    %v496 = vpop.xlane.xlu0 %495
    %v497 = vsel %vm331, %v493, 0.0
    %498 = vadd.xlane.f32.xlu0 %v497
    %v499 = vpop.xlane.xlu0 %498
    %v500 = vrcp.pop %v496
    %v501 = vmul.f32 %v496, %v500
    %v502 = vsub.f32 1.0, %v501
    %v503 = vmul.f32 %v500, %v502
    %v504 = vadd.f32 %v500, %v503
    %vm505 = vweird.f32 %v496
    %vm506 = vweird.f32 %v500
    %vm507 = vmor %vm505, %vm506
    %v508 = vsel %vm507, %v500, %v504
    %v509 = vand.u32 2147483647, %v496
    %vm510 = vcmp.eq.f32.partialorder %v509, 8.507059e+37
    %v511 = vand.u32 %v496, 2147483648
    %v512 = vor.u32 1.1754944e-38, %v511
    %v513 = vsel %vm510, %v512, %v508
    %v514 = vmul.f32 %v491, %v513
    %v515 = vrcp.pop %v499
    %v516 = vmul.f32 %v499, %v515
    %v517 = vsub.f32 1.0, %v516
    %v518 = vmul.f32 %v515, %v517
    %v519 = vadd.f32 %v515, %v518
    %vm520 = vweird.f32 %v499
    %vm521 = vweird.f32 %v515
    %vm522 = vmor %vm520, %vm521
    %v523 = vsel %vm522, %v515, %v519
    %v524 = vand.u32 2147483647, %v499
    %vm525 = vcmp.eq.f32.partialorder %v524, 8.507059e+37
    %v526 = vand.u32 %v499, 2147483648
    %v527 = vor.u32 1.1754944e-38, %v526
    %v528 = vsel %vm525, %v527, %v523
    %v529 = vmul.f32 %v493, %v528
    %531 = vrot.lane.b32.xlu0 %v267, 112
    %v532 = vpop.permute.xlu0 %531
    %v535 = vsel %vm331, %v514, 0
    %537 = vmatpush.msra.mxu0 0.0
    %538 = vmatpush.msra.mxu0 0.0
    %539 = vmatpush.msra.mxu0 0.0
    %540 = vmatpush.msra.mxu0 0.0
    %541 = vmatpush.msra.mxu0 0.0
    %542 = vmatpush.msra.mxu0 0.0
    %543 = vmatpush.msra.mxu0 0.0
    %544 = vmatpush.msra.mxu0 0.0
    %545 = vmatpush.msra.mxu0 0.0
    %546 = vmatpush.msra.mxu0 0.0
    %547 = vmatpush.msra.mxu0 0.0
    %548 = vmatpush.msra.mxu0 0.0
    %549 = vmatpush.msra.mxu0 0.0
    %550 = vmatpush.msra.mxu0 0.0
    %551 = vmatpush.msra.mxu0 0.0
    %552 = vmatpush.msra.mxu0 %v532
    %553 = vmatmul.f32.gmra.mxu0 %v535
    %v554 = vpop.f32.mrf.mxu0
    %v555 = vadd.f32 0.0, %v554
    %556 = vdwg.mxu0
    %558 = vrot.lane.b32.xlu0 %v270, 112
    %v559 = vpop.permute.xlu0 %558
    %v562 = vsel %vm331, %v529, 0
    %564 = vmatpush.msra.mxu0 0.0
    %565 = vmatpush.msra.mxu0 0.0
    %566 = vmatpush.msra.mxu0 0.0
    %567 = vmatpush.msra.mxu0 0.0
    %568 = vmatpush.msra.mxu0 0.0
    %569 = vmatpush.msra.mxu0 0.0
    %570 = vmatpush.msra.mxu0 0.0
    %571 = vmatpush.msra.mxu0 0.0
    %572 = vmatpush.msra.mxu0 0.0
    %573 = vmatpush.msra.mxu0 0.0
    %574 = vmatpush.msra.mxu0 0.0
    %575 = vmatpush.msra.mxu0 0.0
    %576 = vmatpush.msra.mxu0 0.0
    %577 = vmatpush.msra.mxu0 0.0
    %578 = vmatpush.msra.mxu0 0.0
    %579 = vmatpush.msra.mxu0 %v559
    %580 = vmatmul.f32.gmra.mxu0 %v562
    %v581 = vpop.f32.mrf.mxu0
    %v582 = vadd.f32 0.0, %v581
    %583 = vdwg.mxu0
    %584 = vrot.lane.b32.xlu0 %v244, 96
    %v585 = vpop.permute.xlu0 %584
    %586 = vrot.lane.b32.xlu0 %v244, 32
    %v587 = vpop.permute.xlu0 %586
    %v588 = vsel %vm279, %v585, 0
    %v590 = vsel %vm279, %v587, 0
    %592 = vmatpush.xpose.msra.mxu0 0.0
    %593 = vmatpush.xpose.msra.mxu0 0.0
    %594 = vmatpush.xpose.msra.mxu0 0.0
    %595 = vmatpush.xpose.msra.mxu0 0.0
    %596 = vmatpush.xpose.msra.mxu0 0.0
    %597 = vmatpush.xpose.msra.mxu0 0.0
    %598 = vmatpush.xpose.msra.mxu0 0.0
    %599 = vmatpush.xpose.msra.mxu0 0.0
    %600 = vmatpush.xpose.msra.mxu0 0.0
    %601 = vmatpush.xpose.msra.mxu0 0.0
    %602 = vmatpush.xpose.msra.mxu0 0.0
    %603 = vmatpush.xpose.msra.mxu0 0.0
    %604 = vmatpush.xpose.msra.mxu0 0.0
    %605 = vmatpush.xpose.msra.mxu0 0.0
    %606 = vmatpush.xpose.msra.mxu0 0.0
    %607 = vmatpush.xpose.msra.mxu0 %v590
    %608 = vmatmul.f32.gmra.mxu0 %v588
    %v609 = vpop.f32.mrf.mxu0
    %v610 = vadd.f32 %v274, %v609
    %611 = vdwg.mxu0
    %612 = vrot.lane.b32.xlu0 %v247, 96
    %v613 = vpop.permute.xlu0 %612
    %614 = vrot.lane.b32.xlu0 %v247, 32
    %v615 = vpop.permute.xlu0 %614
    %v616 = vsel %vm279, %v613, 0
    %v618 = vsel %vm279, %v615, 0
    %620 = vmatpush.xpose.msra.mxu0 0.0
    %621 = vmatpush.xpose.msra.mxu0 0.0
    %622 = vmatpush.xpose.msra.mxu0 0.0
    %623 = vmatpush.xpose.msra.mxu0 0.0
    %624 = vmatpush.xpose.msra.mxu0 0.0
    %625 = vmatpush.xpose.msra.mxu0 0.0
    %626 = vmatpush.xpose.msra.mxu0 0.0
    %627 = vmatpush.xpose.msra.mxu0 0.0
    %628 = vmatpush.xpose.msra.mxu0 0.0
    %629 = vmatpush.xpose.msra.mxu0 0.0
    %630 = vmatpush.xpose.msra.mxu0 0.0
    %631 = vmatpush.xpose.msra.mxu0 0.0
    %632 = vmatpush.xpose.msra.mxu0 0.0
    %633 = vmatpush.xpose.msra.mxu0 0.0
    %634 = vmatpush.xpose.msra.mxu0 0.0
    %635 = vmatpush.xpose.msra.mxu0 %v618
    %636 = vmatmul.f32.gmra.mxu0 %v616
    %v637 = vpop.f32.mrf.mxu0
    %v638 = vadd.f32 %v274, %v637
    %639 = vdwg.mxu0
    %v640 = vsel %vm331, %v610, -inf
    %641 = vmax.xlane.f32.xlu0 %v640
    %v642 = vpop.xlane.xlu0 %641
    %v643 = vsel %vm331, %v638, -inf
    %644 = vmax.xlane.f32.xlu0 %v643
    %v645 = vpop.xlane.xlu0 %644
    %v646 = vsub.f32 %v610, %v642
    %v647 = vsub.f32 %v638, %v645
    %v648 = vmul.f32 %v646, 1.442695
    %v649 = vpow.pop %v648
    %v650 = vmul.f32 %v647, 1.442695
    %v651 = vpow.pop %v650
    %v652 = vsel %vm331, %v649, 0.0
    %653 = vadd.xlane.f32.xlu0 %v652
    %v654 = vpop.xlane.xlu0 %653
    %v655 = vsel %vm331, %v651, 0.0
    %656 = vadd.xlane.f32.xlu0 %v655
    %v657 = vpop.xlane.xlu0 %656
    %v658 = vrcp.pop %v654
    %v659 = vmul.f32 %v654, %v658
    %v660 = vsub.f32 1.0, %v659
    %v661 = vmul.f32 %v658, %v660
    %v662 = vadd.f32 %v658, %v661
    %vm663 = vweird.f32 %v654
    %vm664 = vweird.f32 %v658
    %vm665 = vmor %vm663, %vm664
    %v666 = vsel %vm665, %v658, %v662
    %v667 = vand.u32 2147483647, %v654
    %vm668 = vcmp.eq.f32.partialorder %v667, 8.507059e+37
    %v669 = vand.u32 %v654, 2147483648
    %v670 = vor.u32 1.1754944e-38, %v669
    %v671 = vsel %vm668, %v670, %v666
    %v672 = vmul.f32 %v649, %v671
    %v673 = vrcp.pop %v657
    %v674 = vmul.f32 %v657, %v673
    %v675 = vsub.f32 1.0, %v674
    %v676 = vmul.f32 %v673, %v675
    %v677 = vadd.f32 %v673, %v676
    %vm678 = vweird.f32 %v657
    %vm679 = vweird.f32 %v673
    %vm680 = vmor %vm678, %vm679
    %v681 = vsel %vm680, %v673, %v677
    %v682 = vand.u32 2147483647, %v657
    %vm683 = vcmp.eq.f32.partialorder %v682, 8.507059e+37
    %v684 = vand.u32 %v657, 2147483648
    %v685 = vor.u32 1.1754944e-38, %v684
    %v686 = vsel %vm683, %v685, %v681
    %v687 = vmul.f32 %v651, %v686
    %688 = vrot.lane.b32.xlu0 %v267, 96
    %v689 = vpop.permute.xlu0 %688
    %v692 = vsel %vm331, %v672, 0
    %694 = vmatpush.msra.mxu0 0.0
    %695 = vmatpush.msra.mxu0 0.0
    %696 = vmatpush.msra.mxu0 0.0
    %697 = vmatpush.msra.mxu0 0.0
    %698 = vmatpush.msra.mxu0 0.0
    %699 = vmatpush.msra.mxu0 0.0
    %700 = vmatpush.msra.mxu0 0.0
    %701 = vmatpush.msra.mxu0 0.0
    %702 = vmatpush.msra.mxu0 0.0
    %703 = vmatpush.msra.mxu0 0.0
    %704 = vmatpush.msra.mxu0 0.0
    %705 = vmatpush.msra.mxu0 0.0
    %706 = vmatpush.msra.mxu0 0.0
    %707 = vmatpush.msra.mxu0 0.0
    %708 = vmatpush.msra.mxu0 0.0
    %709 = vmatpush.msra.mxu0 %v689
    %710 = vmatmul.f32.gmra.mxu0 %v692
    %v711 = vpop.f32.mrf.mxu0
    %v712 = vadd.f32 0.0, %v711
    %713 = vdwg.mxu0
    %714 = vrot.lane.b32.xlu0 %v270, 96
    %v715 = vpop.permute.xlu0 %714
    %v718 = vsel %vm331, %v687, 0
    %720 = vmatpush.msra.mxu0 0.0
    %721 = vmatpush.msra.mxu0 0.0
    %722 = vmatpush.msra.mxu0 0.0
    %723 = vmatpush.msra.mxu0 0.0
    %724 = vmatpush.msra.mxu0 0.0
    %725 = vmatpush.msra.mxu0 0.0
    %726 = vmatpush.msra.mxu0 0.0
    %727 = vmatpush.msra.mxu0 0.0
    %728 = vmatpush.msra.mxu0 0.0
    %729 = vmatpush.msra.mxu0 0.0
    %730 = vmatpush.msra.mxu0 0.0
    %731 = vmatpush.msra.mxu0 0.0
    %732 = vmatpush.msra.mxu0 0.0
    %733 = vmatpush.msra.mxu0 0.0
    %734 = vmatpush.msra.mxu0 0.0
    %735 = vmatpush.msra.mxu0 %v715
    %736 = vmatmul.f32.gmra.mxu0 %v718
    %v737 = vpop.f32.mrf.mxu0
    %v738 = vadd.f32 0.0, %v737
    %739 = vdwg.mxu0
    %740 = vrot.lane.b32.xlu0 %v244, 80
    %v741 = vpop.permute.xlu0 %740
    %742 = vrot.lane.b32.xlu0 %v244, 16
    %v743 = vpop.permute.xlu0 %742
    %v744 = vsel %vm279, %v741, 0
    %v746 = vsel %vm279, %v743, 0
    %748 = vmatpush.xpose.msra.mxu0 0.0
    %749 = vmatpush.xpose.msra.mxu0 0.0
    %750 = vmatpush.xpose.msra.mxu0 0.0
    %751 = vmatpush.xpose.msra.mxu0 0.0
    %752 = vmatpush.xpose.msra.mxu0 0.0
    %753 = vmatpush.xpose.msra.mxu0 0.0
    %754 = vmatpush.xpose.msra.mxu0 0.0
    %755 = vmatpush.xpose.msra.mxu0 0.0
    %756 = vmatpush.xpose.msra.mxu0 0.0
    %757 = vmatpush.xpose.msra.mxu0 0.0
    %758 = vmatpush.xpose.msra.mxu0 0.0
    %759 = vmatpush.xpose.msra.mxu0 0.0
    %760 = vmatpush.xpose.msra.mxu0 0.0
    %761 = vmatpush.xpose.msra.mxu0 0.0
    %762 = vmatpush.xpose.msra.mxu0 0.0
    %763 = vmatpush.xpose.msra.mxu0 %v746
    %764 = vmatmul.f32.gmra.mxu0 %v744
    %v765 = vpop.f32.mrf.mxu0
    %v766 = vadd.f32 %v275, %v765
    %767 = vdwg.mxu0
    %768 = vrot.lane.b32.xlu0 %v247, 80
    %v769 = vpop.permute.xlu0 %768
    %770 = vrot.lane.b32.xlu0 %v247, 16
    %v771 = vpop.permute.xlu0 %770
    %v772 = vsel %vm279, %v769, 0
    %v774 = vsel %vm279, %v771, 0
    %776 = vmatpush.xpose.msra.mxu0 0.0
    %777 = vmatpush.xpose.msra.mxu0 0.0
    %778 = vmatpush.xpose.msra.mxu0 0.0
    %779 = vmatpush.xpose.msra.mxu0 0.0
    %780 = vmatpush.xpose.msra.mxu0 0.0
    %781 = vmatpush.xpose.msra.mxu0 0.0
    %782 = vmatpush.xpose.msra.mxu0 0.0
    %783 = vmatpush.xpose.msra.mxu0 0.0
    %784 = vmatpush.xpose.msra.mxu0 0.0
    %785 = vmatpush.xpose.msra.mxu0 0.0
    %786 = vmatpush.xpose.msra.mxu0 0.0
    %787 = vmatpush.xpose.msra.mxu0 0.0
    %788 = vmatpush.xpose.msra.mxu0 0.0
    %789 = vmatpush.xpose.msra.mxu0 0.0
    %790 = vmatpush.xpose.msra.mxu0 0.0
    %791 = vmatpush.xpose.msra.mxu0 %v774
    %792 = vmatmul.f32.gmra.mxu0 %v772
    %v793 = vpop.f32.mrf.mxu0
    %v794 = vadd.f32 %v275, %v793
    %795 = vdwg.mxu0
    %v796 = vsel %vm331, %v766, -inf
    %797 = vmax.xlane.f32.xlu0 %v796
    %v798 = vpop.xlane.xlu0 %797
    %v799 = vsel %vm331, %v794, -inf
    %800 = vmax.xlane.f32.xlu0 %v799
    %v801 = vpop.xlane.xlu0 %800
    %v802 = vsub.f32 %v766, %v798
    %v803 = vsub.f32 %v794, %v801
    %v804 = vmul.f32 %v802, 1.442695
    %v805 = vpow.pop %v804
    %v806 = vmul.f32 %v803, 1.442695
    %v807 = vpow.pop %v806
    %v808 = vsel %vm331, %v805, 0.0
    %809 = vadd.xlane.f32.xlu0 %v808
    %v810 = vpop.xlane.xlu0 %809
    %v811 = vsel %vm331, %v807, 0.0
    %812 = vadd.xlane.f32.xlu0 %v811
    %v813 = vpop.xlane.xlu0 %812
    %v814 = vrcp.pop %v810
    %v815 = vmul.f32 %v810, %v814
    %v816 = vsub.f32 1.0, %v815
    %v817 = vmul.f32 %v814, %v816
    %v818 = vadd.f32 %v814, %v817
    %vm819 = vweird.f32 %v810
    %vm820 = vweird.f32 %v814
    %vm821 = vmor %vm819, %vm820
    %v822 = vsel %vm821, %v814, %v818
    %v823 = vand.u32 2147483647, %v810
    %vm824 = vcmp.eq.f32.partialorder %v823, 8.507059e+37
    %v825 = vand.u32 %v810, 2147483648
    %v826 = vor.u32 1.1754944e-38, %v825
    %v827 = vsel %vm824, %v826, %v822
    %v828 = vmul.f32 %v805, %v827
    %v829 = vrcp.pop %v813
    %v830 = vmul.f32 %v813, %v829
    %v831 = vsub.f32 1.0, %v830
    %v832 = vmul.f32 %v829, %v831
    %v833 = vadd.f32 %v829, %v832
    %vm834 = vweird.f32 %v813
    %vm835 = vweird.f32 %v829
    %vm836 = vmor %vm834, %vm835
    %v837 = vsel %vm836, %v829, %v833
    %v838 = vand.u32 2147483647, %v813
    %vm839 = vcmp.eq.f32.partialorder %v838, 8.507059e+37
    %v840 = vand.u32 %v813, 2147483648
    %v841 = vor.u32 1.1754944e-38, %v840
    %v842 = vsel %vm839, %v841, %v837
    %v843 = vmul.f32 %v807, %v842
    %844 = vrot.lane.b32.xlu0 %v267, 80
    %v845 = vpop.permute.xlu0 %844
    %v848 = vsel %vm331, %v828, 0
    %850 = vmatpush.msra.mxu0 0.0
    %851 = vmatpush.msra.mxu0 0.0
    %852 = vmatpush.msra.mxu0 0.0
    %853 = vmatpush.msra.mxu0 0.0
    %854 = vmatpush.msra.mxu0 0.0
    %855 = vmatpush.msra.mxu0 0.0
    %856 = vmatpush.msra.mxu0 0.0
    %857 = vmatpush.msra.mxu0 0.0
    %858 = vmatpush.msra.mxu0 0.0
    %859 = vmatpush.msra.mxu0 0.0
    %860 = vmatpush.msra.mxu0 0.0
    %861 = vmatpush.msra.mxu0 0.0
    %862 = vmatpush.msra.mxu0 0.0
    %863 = vmatpush.msra.mxu0 0.0
    %864 = vmatpush.msra.mxu0 0.0
    %865 = vmatpush.msra.mxu0 %v845
    %866 = vmatmul.f32.gmra.mxu0 %v848
    %v867 = vpop.f32.mrf.mxu0
    %v868 = vadd.f32 0.0, %v867
    %869 = vdwg.mxu0
    %870 = vrot.lane.b32.xlu0 %v270, 80
    %v871 = vpop.permute.xlu0 %870
    %v874 = vsel %vm331, %v843, 0
    %876 = vmatpush.msra.mxu0 0.0
    %877 = vmatpush.msra.mxu0 0.0
    %878 = vmatpush.msra.mxu0 0.0
    %879 = vmatpush.msra.mxu0 0.0
    %880 = vmatpush.msra.mxu0 0.0
    %881 = vmatpush.msra.mxu0 0.0
    %882 = vmatpush.msra.mxu0 0.0
    %883 = vmatpush.msra.mxu0 0.0
    %884 = vmatpush.msra.mxu0 0.0
    %885 = vmatpush.msra.mxu0 0.0
    %886 = vmatpush.msra.mxu0 0.0
    %887 = vmatpush.msra.mxu0 0.0
    %888 = vmatpush.msra.mxu0 0.0
    %889 = vmatpush.msra.mxu0 0.0
    %890 = vmatpush.msra.mxu0 0.0
    %891 = vmatpush.msra.mxu0 %v871
    %892 = vmatmul.f32.gmra.mxu0 %v874
    %v893 = vpop.f32.mrf.mxu0
    %v894 = vadd.f32 0.0, %v893
    %895 = vdwg.mxu0
    %898 = vrot.lane.b32.xlu0 %v555, 16
    %v899 = vpop.permute.xlu0 %898
    %900 = vrot.lane.b32.xlu0 %v582, 16
    %v901 = vpop.permute.xlu0 %900
    %906 = vrot.lane.b32.xlu0 %v712, 32
    %v907 = vpop.permute.xlu0 %906
    %908 = vrot.lane.b32.xlu0 %v738, 32
    %v909 = vpop.permute.xlu0 %908
    %914 = vrot.lane.b32.xlu0 %v868, 48
    %v915 = vpop.permute.xlu0 %914
    %916 = vrot.lane.b32.xlu0 %v894, 48
    %v917 = vpop.permute.xlu0 %916
    %v920 = vsel %vm279, %v401, %v899
    %v921 = vsel %vm279, %v424, %v901
    %vm922 = vcmask 261120
    %v923 = vsel %vm922, %v920, %v907
    %v924 = vsel %vm922, %v921, %v909
    %vm925 = vcmask 392192
    %v926 = vsel %vm925, %v923, %v915
    %v927 = vsel %vm925, %v924, %v917
    %v928 = vld [vmem:[%s7] sm:$0xff]
    %v929 = vld [vmem:[%s7 + $0x8] sm:$0xff]
    %v930 = vld [vmem:[%s7 + $0x10] sm:$0xff]
    %v931 = vld [vmem:[%s7 + $0x18] sm:$0xff]
    %v932 = vld [vmem:[%s7 + $0x20] sm:$0xff]
    %v933 = vld [vmem:[%s7 + $0x28] sm:$0xff]
    %v934 = vld [vmem:[%s7 + $0x30] sm:$0xff]
    %v935 = vld [vmem:[%s7 + $0x38] sm:$0xff]
    %v937 = vsel %vm159, %v926, 0
    %v940 = vsel %vm159, %v927, 0
    %942 = vmatpush.msra.mxu0 0.0
    %943 = vmatpush.msra.mxu0 0.0
    %944 = vmatpush.msra.mxu0 0.0
    %945 = vmatpush.msra.mxu0 0.0
    %946 = vmatpush.msra.mxu0 0.0
    %947 = vmatpush.msra.mxu0 0.0
    %948 = vmatpush.msra.mxu0 0.0
    %949 = vmatpush.msra.mxu0 0.0
    %950 = vmatpush.msra.mxu0 %v935
    %951 = vmatpush.msra.mxu0 %v934
    %952 = vmatpush.msra.mxu0 %v933
    %953 = vmatpush.msra.mxu0 %v932
    %954 = vmatpush.msra.mxu0 %v931
    %955 = vmatpush.msra.mxu0 %v930
    %956 = vmatpush.msra.mxu0 %v929
    %957 = vmatpush.msra.mxu0 %v928
    %958 = vmatmul.f32.gmra.mxu0 %v937
    %v959 = vpop.f32.mrf.mxu0
    %v960 = vadd.f32 0.0, %v959
    %961 = vmatmul.f32.gmra.mxu0 %v940
    %v962 = vpop.f32.mrf.mxu0
    %v963 = vadd.f32 0.0, %v962
    %964 = vdwg.mxu0
    %v965 = vadd.f32 %v154, %v960
    %v966 = vadd.f32 %v155, %v963
    %v967 = vld [vmem:[%s4] sm:$0x1]
    %v968 = vmul.f32 %v965, %v965
    %v969 = vmul.f32 %v966, %v966
    %v970 = vsel %vm159, %v968, 0.0
    %971 = vadd.xlane.f32.xlu0 %v970
    %v972 = vpop.xlane.xlu0 %971
    %v973 = vsel %vm159, %v969, 0.0
    %974 = vadd.xlane.f32.xlu0 %v973
    %v975 = vpop.xlane.xlu0 %974
    %v976 = vmul.f32 %v972, %v172
    %v977 = vmul.f32 %v975, %v172
    %v978 = vadd.f32 %v976, 1e-06
    %v979 = vadd.f32 %v977, 1e-06
    %v980 = vrsqrt.pop %v978
    %v981 = vmul.f32 %v980, %v978
    %v982 = vmul.f32 %v981, %v980
    %v983 = vmul.f32 0.5, %v982
    %v984 = vsub.f32 1.5, %v983
    %v985 = vmul.f32 %v980, %v984
    %vm986 = vweird.f32 %v978
    %vm987 = vweird.f32 %v980
    %vm988 = vmor %vm986, %vm987
    %v989 = vsel %vm988, %v980, %v985
    %v990 = vrsqrt.pop %v979
    %v991 = vmul.f32 %v990, %v979
    %v992 = vmul.f32 %v991, %v990
    %v993 = vmul.f32 0.5, %v992
    %v994 = vsub.f32 1.5, %v993
    %v995 = vmul.f32 %v990, %v994
    %vm996 = vweird.f32 %v979
    %vm997 = vweird.f32 %v990
    %vm998 = vmor %vm996, %vm997
    %v999 = vsel %vm998, %v990, %v995
    %v1000 = vmul.f32 %v965, %v989
    %v1001 = vmul.f32 %v966, %v999
    %v1003 = vperm.slane %v967, 0
    %v1005 = vmul.f32 %v1000, %v1003
    %v1006 = vmul.f32 %v1001, %v1003
    %v1007 = vld [vmem:[#allocation8] sm:$0xff]
    %v1008 = vld [vmem:[#allocation8 + $0x8] sm:$0xff]
    %v1009 = vld [vmem:[#allocation8 + $0x10] sm:$0xff]
    %v1010 = vld [vmem:[#allocation8 + $0x18] sm:$0xff]
    %v1011 = vld [vmem:[#allocation8 + $0x20] sm:$0xff]
    %v1012 = vld [vmem:[#allocation8 + $0x28] sm:$0xff]
    %v1013 = vld [vmem:[#allocation8 + $0x30] sm:$0xff]
    %v1014 = vld [vmem:[#allocation8 + $0x38] sm:$0xff]
    %v1016 = vsel %vm159, %v1005, 0
    %v1019 = vsel %vm159, %v1006, 0
    %1021 = vmatpush.msra.mxu0 0.0
    %1022 = vmatpush.msra.mxu0 0.0
    %1023 = vmatpush.msra.mxu0 0.0
    %1024 = vmatpush.msra.mxu0 0.0
    %1025 = vmatpush.msra.mxu0 0.0
    %1026 = vmatpush.msra.mxu0 0.0
    %1027 = vmatpush.msra.mxu0 0.0
    %1028 = vmatpush.msra.mxu0 0.0
    %1029 = vmatpush.msra.mxu0 %v1014
    %1030 = vmatpush.msra.mxu0 %v1013
    %1031 = vmatpush.msra.mxu0 %v1012
    %1032 = vmatpush.msra.mxu0 %v1011
    %1033 = vmatpush.msra.mxu0 %v1010
    %1034 = vmatpush.msra.mxu0 %v1009
    %1035 = vmatpush.msra.mxu0 %v1008
    %1036 = vmatpush.msra.mxu0 %v1007
    %1037 = vmatmul.f32.gmra.mxu0 %v1016
    %v1038 = vpop.f32.mrf.mxu0
    %v1039 = vadd.f32 0.0, %v1038
    %1040 = vmatmul.f32.gmra.mxu0 %v1019
    %v1041 = vpop.f32.mrf.mxu0
    %v1042 = vadd.f32 0.0, %v1041
    %1043 = vdwg.mxu0
    %v1044 = vld [vmem:[#allocation5] sm:$0xff]
    %v1045 = vld [vmem:[#allocation5 + $0x8] sm:$0xff]
    %v1046 = vld [vmem:[#allocation10] sm:$0xff]
    %v1047 = vld [vmem:[#allocation10 + $0x8] sm:$0xff]
    %v1048 = vld [vmem:[#allocation10 + $0x10] sm:$0xff]
    %v1049 = vld [vmem:[#allocation10 + $0x18] sm:$0xff]
    %v1050 = vld [vmem:[#allocation10 + $0x20] sm:$0xff]
    %v1051 = vld [vmem:[#allocation10 + $0x28] sm:$0xff]
    %v1052 = vld [vmem:[#allocation10 + $0x30] sm:$0xff]
    %v1053 = vld [vmem:[#allocation10 + $0x38] sm:$0xff]
    %v1055 = vsel %vm159, %v1044, 0
    %v1058 = vsel %vm159, %v1045, 0
    %1060 = vmatpush.msra.mxu0 0.0
    %1061 = vmatpush.msra.mxu0 0.0
    %1062 = vmatpush.msra.mxu0 0.0
    %1063 = vmatpush.msra.mxu0 0.0
    %1064 = vmatpush.msra.mxu0 0.0
    %1065 = vmatpush.msra.mxu0 0.0
    %1066 = vmatpush.msra.mxu0 0.0
    %1067 = vmatpush.msra.mxu0 0.0
    %1068 = vmatpush.msra.mxu0 %v1053
    %1069 = vmatpush.msra.mxu0 %v1052
    %1070 = vmatpush.msra.mxu0 %v1051
    %1071 = vmatpush.msra.mxu0 %v1050
    %1072 = vmatpush.msra.mxu0 %v1049
    %1073 = vmatpush.msra.mxu0 %v1048
    %1074 = vmatpush.msra.mxu0 %v1047
    %1075 = vmatpush.msra.mxu0 %v1046
    %1076 = vmatmul.f32.gmra.mxu0 %v1055
    %v1077 = vpop.f32.mrf.mxu0
    %v1078 = vadd.f32 0.0, %v1077
    %1079 = vmatmul.f32.gmra.mxu0 %v1058
    %v1080 = vpop.f32.mrf.mxu0
    %v1081 = vadd.f32 0.0, %v1080
    %1082 = vdwg.mxu0
    %v1084 = vsel %vm279, %v1039, 0
    %v1087 = vsel %vm279, %v1078, 0
    %1089 = vmatpush.xpose.msra.mxu0 0.0
    %1090 = vmatpush.xpose.msra.mxu0 0.0
    %1091 = vmatpush.xpose.msra.mxu0 0.0
    %1092 = vmatpush.xpose.msra.mxu0 0.0
    %1093 = vmatpush.xpose.msra.mxu0 0.0
    %1094 = vmatpush.xpose.msra.mxu0 0.0
    %1095 = vmatpush.xpose.msra.mxu0 0.0
    %1096 = vmatpush.xpose.msra.mxu0 0.0
    %1097 = vmatpush.xpose.msra.mxu0 0.0
    %1098 = vmatpush.xpose.msra.mxu0 0.0
    %1099 = vmatpush.xpose.msra.mxu0 0.0
    %1100 = vmatpush.xpose.msra.mxu0 0.0
    %1101 = vmatpush.xpose.msra.mxu0 0.0
    %1102 = vmatpush.xpose.msra.mxu0 0.0
    %1103 = vmatpush.xpose.msra.mxu0 0.0
    %1104 = vmatpush.xpose.msra.mxu0 %v1087
    %1105 = vmatmul.f32.gmra.mxu0 %v1084
    %v1106 = vpop.f32.mrf.mxu0
    %v1107 = vadd.f32 0.0, %v1106
    %1108 = vdwg.mxu0
    %v1110 = vsel %vm279, %v1042, 0
    %v1113 = vsel %vm279, %v1081, 0
    %1115 = vmatpush.xpose.msra.mxu0 0.0
    %1116 = vmatpush.xpose.msra.mxu0 0.0
    %1117 = vmatpush.xpose.msra.mxu0 0.0
    %1118 = vmatpush.xpose.msra.mxu0 0.0
    %1119 = vmatpush.xpose.msra.mxu0 0.0
    %1120 = vmatpush.xpose.msra.mxu0 0.0
    %1121 = vmatpush.xpose.msra.mxu0 0.0
    %1122 = vmatpush.xpose.msra.mxu0 0.0
    %1123 = vmatpush.xpose.msra.mxu0 0.0
    %1124 = vmatpush.xpose.msra.mxu0 0.0
    %1125 = vmatpush.xpose.msra.mxu0 0.0
    %1126 = vmatpush.xpose.msra.mxu0 0.0
    %1127 = vmatpush.xpose.msra.mxu0 0.0
    %1128 = vmatpush.xpose.msra.mxu0 0.0
    %1129 = vmatpush.xpose.msra.mxu0 0.0
    %1130 = vmatpush.xpose.msra.mxu0 %v1113
    %1131 = vmatmul.f32.gmra.mxu0 %v1110
    %v1132 = vpop.f32.mrf.mxu0
    %v1133 = vadd.f32 0.0, %v1132
    %1134 = vdwg.mxu0
    %v1135 = vsel %vm331, %v1107, -inf
    %1136 = vmax.xlane.f32.xlu0 %v1135
    %v1137 = vpop.xlane.xlu0 %1136
    %v1138 = vsel %vm331, %v1133, -inf
    %1139 = vmax.xlane.f32.xlu0 %v1138
    %v1140 = vpop.xlane.xlu0 %1139
    %v1141 = vsub.f32 %v1107, %v1137
    %v1142 = vsub.f32 %v1133, %v1140
    %v1143 = vmul.f32 %v1141, 1.442695
    %v1144 = vpow.pop %v1143
    %v1145 = vmul.f32 %v1142, 1.442695
    %v1146 = vpow.pop %v1145
    %v1147 = vsel %vm331, %v1144, 0.0
    %1148 = vadd.xlane.f32.xlu0 %v1147
    %v1149 = vpop.xlane.xlu0 %1148
    %v1150 = vsel %vm331, %v1146, 0.0
    %1151 = vadd.xlane.f32.xlu0 %v1150
    %v1152 = vpop.xlane.xlu0 %1151
    %v1153 = vrcp.pop %v1149
    %v1154 = vmul.f32 %v1149, %v1153
    %v1155 = vsub.f32 1.0, %v1154
    %v1156 = vmul.f32 %v1153, %v1155
    %v1157 = vadd.f32 %v1153, %v1156
    %vm1158 = vweird.f32 %v1149
    %vm1159 = vweird.f32 %v1153
    %vm1160 = vmor %vm1158, %vm1159
    %v1161 = vsel %vm1160, %v1153, %v1157
    %v1162 = vand.u32 2147483647, %v1149
    %vm1163 = vcmp.eq.f32.partialorder %v1162, 8.507059e+37
    %v1164 = vand.u32 %v1149, 2147483648
    %v1165 = vor.u32 1.1754944e-38, %v1164
    %v1166 = vsel %vm1163, %v1165, %v1161
    %v1167 = vmul.f32 %v1144, %v1166
    %v1168 = vrcp.pop %v1152
    %v1169 = vmul.f32 %v1152, %v1168
    %v1170 = vsub.f32 1.0, %v1169
    %v1171 = vmul.f32 %v1168, %v1170
    %v1172 = vadd.f32 %v1168, %v1171
    %vm1173 = vweird.f32 %v1152
    %vm1174 = vweird.f32 %v1168
    %vm1175 = vmor %vm1173, %vm1174
    %v1176 = vsel %vm1175, %v1168, %v1172
    %v1177 = vand.u32 2147483647, %v1152
    %vm1178 = vcmp.eq.f32.partialorder %v1177, 8.507059e+37
    %v1179 = vand.u32 %v1152, 2147483648
    %v1180 = vor.u32 1.1754944e-38, %v1179
    %v1181 = vsel %vm1178, %v1180, %v1176
    %v1182 = vmul.f32 %v1146, %v1181
    %1183 = vrot.lane.b32.xlu0 %v1078, 64
    %v1184 = vpop.permute.xlu0 %1183
    %v1187 = vsel %vm331, %v1167, 0
    %1189 = vmatpush.msra.mxu0 0.0
    %1190 = vmatpush.msra.mxu0 0.0
    %1191 = vmatpush.msra.mxu0 0.0
    %1192 = vmatpush.msra.mxu0 0.0
    %1193 = vmatpush.msra.mxu0 0.0
    %1194 = vmatpush.msra.mxu0 0.0
    %1195 = vmatpush.msra.mxu0 0.0
    %1196 = vmatpush.msra.mxu0 0.0
    %1197 = vmatpush.msra.mxu0 0.0
    %1198 = vmatpush.msra.mxu0 0.0
    %1199 = vmatpush.msra.mxu0 0.0
    %1200 = vmatpush.msra.mxu0 0.0
    %1201 = vmatpush.msra.mxu0 0.0
    %1202 = vmatpush.msra.mxu0 0.0
    %1203 = vmatpush.msra.mxu0 0.0
    %1204 = vmatpush.msra.mxu0 %v1184
    %1205 = vmatmul.f32.gmra.mxu0 %v1187
    %v1206 = vpop.f32.mrf.mxu0
    %v1207 = vadd.f32 0.0, %v1206
    %1208 = vdwg.mxu0
    %1209 = vrot.lane.b32.xlu0 %v1081, 64
    %v1210 = vpop.permute.xlu0 %1209
    %v1213 = vsel %vm331, %v1182, 0
    %1215 = vmatpush.msra.mxu0 0.0
    %1216 = vmatpush.msra.mxu0 0.0
    %1217 = vmatpush.msra.mxu0 0.0
    %1218 = vmatpush.msra.mxu0 0.0
    %1219 = vmatpush.msra.mxu0 0.0
    %1220 = vmatpush.msra.mxu0 0.0
    %1221 = vmatpush.msra.mxu0 0.0
    %1222 = vmatpush.msra.mxu0 0.0
    %1223 = vmatpush.msra.mxu0 0.0
    %1224 = vmatpush.msra.mxu0 0.0
    %1225 = vmatpush.msra.mxu0 0.0
    %1226 = vmatpush.msra.mxu0 0.0
    %1227 = vmatpush.msra.mxu0 0.0
    %1228 = vmatpush.msra.mxu0 0.0
    %1229 = vmatpush.msra.mxu0 0.0
    %1230 = vmatpush.msra.mxu0 %v1210
    %1231 = vmatmul.f32.gmra.mxu0 %v1213
    %v1232 = vpop.f32.mrf.mxu0
    %v1233 = vadd.f32 0.0, %v1232
    %1234 = vdwg.mxu0
    %1235 = vrot.lane.b32.xlu0 %v1039, 112
    %v1236 = vpop.permute.xlu0 %1235
    %1237 = vrot.lane.b32.xlu0 %v1078, 112
    %v1238 = vpop.permute.xlu0 %1237
    %v1239 = vsel %vm279, %v1236, 0
    %v1241 = vsel %vm279, %v1238, 0
    %1243 = vmatpush.xpose.msra.mxu0 0.0
    %1244 = vmatpush.xpose.msra.mxu0 0.0
    %1245 = vmatpush.xpose.msra.mxu0 0.0
    %1246 = vmatpush.xpose.msra.mxu0 0.0
    %1247 = vmatpush.xpose.msra.mxu0 0.0
    %1248 = vmatpush.xpose.msra.mxu0 0.0
    %1249 = vmatpush.xpose.msra.mxu0 0.0
    %1250 = vmatpush.xpose.msra.mxu0 0.0
    %1251 = vmatpush.xpose.msra.mxu0 0.0
    %1252 = vmatpush.xpose.msra.mxu0 0.0
    %1253 = vmatpush.xpose.msra.mxu0 0.0
    %1254 = vmatpush.xpose.msra.mxu0 0.0
    %1255 = vmatpush.xpose.msra.mxu0 0.0
    %1256 = vmatpush.xpose.msra.mxu0 0.0
    %1257 = vmatpush.xpose.msra.mxu0 0.0
    %1258 = vmatpush.xpose.msra.mxu0 %v1241
    %1259 = vmatmul.f32.gmra.mxu0 %v1239
    %v1260 = vpop.f32.mrf.mxu0
    %v1261 = vadd.f32 0.0, %v1260
    %1262 = vdwg.mxu0
    %1263 = vrot.lane.b32.xlu0 %v1042, 112
    %v1264 = vpop.permute.xlu0 %1263
    %1265 = vrot.lane.b32.xlu0 %v1081, 112
    %v1266 = vpop.permute.xlu0 %1265
    %v1267 = vsel %vm279, %v1264, 0
    %v1269 = vsel %vm279, %v1266, 0
    %1271 = vmatpush.xpose.msra.mxu0 0.0
    %1272 = vmatpush.xpose.msra.mxu0 0.0
    %1273 = vmatpush.xpose.msra.mxu0 0.0
    %1274 = vmatpush.xpose.msra.mxu0 0.0
    %1275 = vmatpush.xpose.msra.mxu0 0.0
    %1276 = vmatpush.xpose.msra.mxu0 0.0
    %1277 = vmatpush.xpose.msra.mxu0 0.0
    %1278 = vmatpush.xpose.msra.mxu0 0.0
    %1279 = vmatpush.xpose.msra.mxu0 0.0
    %1280 = vmatpush.xpose.msra.mxu0 0.0
    %1281 = vmatpush.xpose.msra.mxu0 0.0
    %1282 = vmatpush.xpose.msra.mxu0 0.0
    %1283 = vmatpush.xpose.msra.mxu0 0.0
    %1284 = vmatpush.xpose.msra.mxu0 0.0
    %1285 = vmatpush.xpose.msra.mxu0 0.0
    %1286 = vmatpush.xpose.msra.mxu0 %v1269
    %1287 = vmatmul.f32.gmra.mxu0 %v1267
    %v1288 = vpop.f32.mrf.mxu0
    %v1289 = vadd.f32 0.0, %v1288
    %1290 = vdwg.mxu0
    %v1291 = vsel %vm331, %v1261, -inf
    %1292 = vmax.xlane.f32.xlu0 %v1291
    %v1293 = vpop.xlane.xlu0 %1292
    %v1294 = vsel %vm331, %v1289, -inf
    %1295 = vmax.xlane.f32.xlu0 %v1294
    %v1296 = vpop.xlane.xlu0 %1295
    %v1297 = vsub.f32 %v1261, %v1293
    %v1298 = vsub.f32 %v1289, %v1296
    %v1299 = vmul.f32 %v1297, 1.442695
    %v1300 = vpow.pop %v1299
    %v1301 = vmul.f32 %v1298, 1.442695
    %v1302 = vpow.pop %v1301
    %v1303 = vsel %vm331, %v1300, 0.0
    %1304 = vadd.xlane.f32.xlu0 %v1303
    %v1305 = vpop.xlane.xlu0 %1304
    %v1306 = vsel %vm331, %v1302, 0.0
    %1307 = vadd.xlane.f32.xlu0 %v1306
    %v1308 = vpop.xlane.xlu0 %1307
    %v1309 = vrcp.pop %v1305
    %v1310 = vmul.f32 %v1305, %v1309
    %v1311 = vsub.f32 1.0, %v1310
    %v1312 = vmul.f32 %v1309, %v1311
    %v1313 = vadd.f32 %v1309, %v1312
    %vm1314 = vweird.f32 %v1305
    %vm1315 = vweird.f32 %v1309
    %vm1316 = vmor %vm1314, %vm1315
    %v1317 = vsel %vm1316, %v1309, %v1313
    %v1318 = vand.u32 2147483647, %v1305
    %vm1319 = vcmp.eq.f32.partialorder %v1318, 8.507059e+37
    %v1320 = vand.u32 %v1305, 2147483648
    %v1321 = vor.u32 1.1754944e-38, %v1320
    %v1322 = vsel %vm1319, %v1321, %v1317
    %v1323 = vmul.f32 %v1300, %v1322
    %v1324 = vrcp.pop %v1308
    %v1325 = vmul.f32 %v1308, %v1324
    %v1326 = vsub.f32 1.0, %v1325
    %v1327 = vmul.f32 %v1324, %v1326
    %v1328 = vadd.f32 %v1324, %v1327
    %vm1329 = vweird.f32 %v1308
    %vm1330 = vweird.f32 %v1324
    %vm1331 = vmor %vm1329, %vm1330
    %v1332 = vsel %vm1331, %v1324, %v1328
    %v1333 = vand.u32 2147483647, %v1308
    %vm1334 = vcmp.eq.f32.partialorder %v1333, 8.507059e+37
    %v1335 = vand.u32 %v1308, 2147483648
    %v1336 = vor.u32 1.1754944e-38, %v1335
    %v1337 = vsel %vm1334, %v1336, %v1332
    %v1338 = vmul.f32 %v1302, %v1337
    %1339 = vrot.lane.b32.xlu0 %v1078, 48
    %v1340 = vpop.permute.xlu0 %1339
    %v1343 = vsel %vm331, %v1323, 0
    %1345 = vmatpush.msra.mxu0 0.0
    %1346 = vmatpush.msra.mxu0 0.0
    %1347 = vmatpush.msra.mxu0 0.0
    %1348 = vmatpush.msra.mxu0 0.0
    %1349 = vmatpush.msra.mxu0 0.0
    %1350 = vmatpush.msra.mxu0 0.0
    %1351 = vmatpush.msra.mxu0 0.0
    %1352 = vmatpush.msra.mxu0 0.0
    %1353 = vmatpush.msra.mxu0 0.0
    %1354 = vmatpush.msra.mxu0 0.0
    %1355 = vmatpush.msra.mxu0 0.0
    %1356 = vmatpush.msra.mxu0 0.0
    %1357 = vmatpush.msra.mxu0 0.0
    %1358 = vmatpush.msra.mxu0 0.0
    %1359 = vmatpush.msra.mxu0 0.0
    %1360 = vmatpush.msra.mxu0 %v1340
    %1361 = vmatmul.f32.gmra.mxu0 %v1343
    %v1362 = vpop.f32.mrf.mxu0
    %v1363 = vadd.f32 0.0, %v1362
    %1364 = vdwg.mxu0
    %1365 = vrot.lane.b32.xlu0 %v1081, 48
    %v1366 = vpop.permute.xlu0 %1365
    %v1369 = vsel %vm331, %v1338, 0
    %1371 = vmatpush.msra.mxu0 0.0
    %1372 = vmatpush.msra.mxu0 0.0
    %1373 = vmatpush.msra.mxu0 0.0
    %1374 = vmatpush.msra.mxu0 0.0
    %1375 = vmatpush.msra.mxu0 0.0
    %1376 = vmatpush.msra.mxu0 0.0
    %1377 = vmatpush.msra.mxu0 0.0
    %1378 = vmatpush.msra.mxu0 0.0
    %1379 = vmatpush.msra.mxu0 0.0
    %1380 = vmatpush.msra.mxu0 0.0
    %1381 = vmatpush.msra.mxu0 0.0
    %1382 = vmatpush.msra.mxu0 0.0
    %1383 = vmatpush.msra.mxu0 0.0
    %1384 = vmatpush.msra.mxu0 0.0
    %1385 = vmatpush.msra.mxu0 0.0
    %1386 = vmatpush.msra.mxu0 %v1366
    %1387 = vmatmul.f32.gmra.mxu0 %v1369
    %v1388 = vpop.f32.mrf.mxu0
    %v1389 = vadd.f32 0.0, %v1388
    %1390 = vdwg.mxu0
    %1391 = vrot.lane.b32.xlu0 %v1039, 96
    %v1392 = vpop.permute.xlu0 %1391
    %1393 = vrot.lane.b32.xlu0 %v1078, 96
    %v1394 = vpop.permute.xlu0 %1393
    %v1395 = vsel %vm279, %v1392, 0
    %v1397 = vsel %vm279, %v1394, 0
    %1399 = vmatpush.xpose.msra.mxu0 0.0
    %1400 = vmatpush.xpose.msra.mxu0 0.0
    %1401 = vmatpush.xpose.msra.mxu0 0.0
    %1402 = vmatpush.xpose.msra.mxu0 0.0
    %1403 = vmatpush.xpose.msra.mxu0 0.0
    %1404 = vmatpush.xpose.msra.mxu0 0.0
    %1405 = vmatpush.xpose.msra.mxu0 0.0
    %1406 = vmatpush.xpose.msra.mxu0 0.0
    %1407 = vmatpush.xpose.msra.mxu0 0.0
    %1408 = vmatpush.xpose.msra.mxu0 0.0
    %1409 = vmatpush.xpose.msra.mxu0 0.0
    %1410 = vmatpush.xpose.msra.mxu0 0.0
    %1411 = vmatpush.xpose.msra.mxu0 0.0
    %1412 = vmatpush.xpose.msra.mxu0 0.0
    %1413 = vmatpush.xpose.msra.mxu0 0.0
    %1414 = vmatpush.xpose.msra.mxu0 %v1397
    %1415 = vmatmul.f32.gmra.mxu0 %v1395
    %v1416 = vpop.f32.mrf.mxu0
    %v1417 = vadd.f32 0.0, %v1416
    %1418 = vdwg.mxu0
    %1419 = vrot.lane.b32.xlu0 %v1042, 96
    %v1420 = vpop.permute.xlu0 %1419
    %1421 = vrot.lane.b32.xlu0 %v1081, 96
    %v1422 = vpop.permute.xlu0 %1421
    %v1423 = vsel %vm279, %v1420, 0
    %v1425 = vsel %vm279, %v1422, 0
    %1427 = vmatpush.xpose.msra.mxu0 0.0
    %1428 = vmatpush.xpose.msra.mxu0 0.0
    %1429 = vmatpush.xpose.msra.mxu0 0.0
    %1430 = vmatpush.xpose.msra.mxu0 0.0
    %1431 = vmatpush.xpose.msra.mxu0 0.0
    %1432 = vmatpush.xpose.msra.mxu0 0.0
    %1433 = vmatpush.xpose.msra.mxu0 0.0
    %1434 = vmatpush.xpose.msra.mxu0 0.0
    %1435 = vmatpush.xpose.msra.mxu0 0.0
    %1436 = vmatpush.xpose.msra.mxu0 0.0
    %1437 = vmatpush.xpose.msra.mxu0 0.0
    %1438 = vmatpush.xpose.msra.mxu0 0.0
    %1439 = vmatpush.xpose.msra.mxu0 0.0
    %1440 = vmatpush.xpose.msra.mxu0 0.0
    %1441 = vmatpush.xpose.msra.mxu0 0.0
    %1442 = vmatpush.xpose.msra.mxu0 %v1425
    %1443 = vmatmul.f32.gmra.mxu0 %v1423
    %v1444 = vpop.f32.mrf.mxu0
    %v1445 = vadd.f32 0.0, %v1444
    %1446 = vdwg.mxu0
    %v1447 = vsel %vm331, %v1417, -inf
    %1448 = vmax.xlane.f32.xlu0 %v1447
    %v1449 = vpop.xlane.xlu0 %1448
    %v1450 = vsel %vm331, %v1445, -inf
    %1451 = vmax.xlane.f32.xlu0 %v1450
    %v1452 = vpop.xlane.xlu0 %1451
    %v1453 = vsub.f32 %v1417, %v1449
    %v1454 = vsub.f32 %v1445, %v1452
    %v1455 = vmul.f32 %v1453, 1.442695
    %v1456 = vpow.pop %v1455
    %v1457 = vmul.f32 %v1454, 1.442695
    %v1458 = vpow.pop %v1457
    %v1459 = vsel %vm331, %v1456, 0.0
    %1460 = vadd.xlane.f32.xlu0 %v1459
    %v1461 = vpop.xlane.xlu0 %1460
    %v1462 = vsel %vm331, %v1458, 0.0
    %1463 = vadd.xlane.f32.xlu0 %v1462
    %v1464 = vpop.xlane.xlu0 %1463
    %v1465 = vrcp.pop %v1461
    %v1466 = vmul.f32 %v1461, %v1465
    %v1467 = vsub.f32 1.0, %v1466
    %v1468 = vmul.f32 %v1465, %v1467
    %v1469 = vadd.f32 %v1465, %v1468
    %vm1470 = vweird.f32 %v1461
    %vm1471 = vweird.f32 %v1465
    %vm1472 = vmor %vm1470, %vm1471
    %v1473 = vsel %vm1472, %v1465, %v1469
    %v1474 = vand.u32 2147483647, %v1461
    %vm1475 = vcmp.eq.f32.partialorder %v1474, 8.507059e+37
    %v1476 = vand.u32 %v1461, 2147483648
    %v1477 = vor.u32 1.1754944e-38, %v1476
    %v1478 = vsel %vm1475, %v1477, %v1473
    %v1479 = vmul.f32 %v1456, %v1478
    %v1480 = vrcp.pop %v1464
    %v1481 = vmul.f32 %v1464, %v1480
    %v1482 = vsub.f32 1.0, %v1481
    %v1483 = vmul.f32 %v1480, %v1482
    %v1484 = vadd.f32 %v1480, %v1483
    %vm1485 = vweird.f32 %v1464
    %vm1486 = vweird.f32 %v1480
    %vm1487 = vmor %vm1485, %vm1486
    %v1488 = vsel %vm1487, %v1480, %v1484
    %v1489 = vand.u32 2147483647, %v1464
    %vm1490 = vcmp.eq.f32.partialorder %v1489, 8.507059e+37
    %v1491 = vand.u32 %v1464, 2147483648
    %v1492 = vor.u32 1.1754944e-38, %v1491
    %v1493 = vsel %vm1490, %v1492, %v1488
    %v1494 = vmul.f32 %v1458, %v1493
    %1495 = vrot.lane.b32.xlu0 %v1078, 32
    %v1496 = vpop.permute.xlu0 %1495
    %v1499 = vsel %vm331, %v1479, 0
    %1501 = vmatpush.msra.mxu0 0.0
    %1502 = vmatpush.msra.mxu0 0.0
    %1503 = vmatpush.msra.mxu0 0.0
    %1504 = vmatpush.msra.mxu0 0.0
    %1505 = vmatpush.msra.mxu0 0.0
    %1506 = vmatpush.msra.mxu0 0.0
    %1507 = vmatpush.msra.mxu0 0.0
    %1508 = vmatpush.msra.mxu0 0.0
    %1509 = vmatpush.msra.mxu0 0.0
    %1510 = vmatpush.msra.mxu0 0.0
    %1511 = vmatpush.msra.mxu0 0.0
    %1512 = vmatpush.msra.mxu0 0.0
    %1513 = vmatpush.msra.mxu0 0.0
    %1514 = vmatpush.msra.mxu0 0.0
    %1515 = vmatpush.msra.mxu0 0.0
    %1516 = vmatpush.msra.mxu0 %v1496
    %1517 = vmatmul.f32.gmra.mxu0 %v1499
    %v1518 = vpop.f32.mrf.mxu0
    %v1519 = vadd.f32 0.0, %v1518
    %1520 = vdwg.mxu0
    %1521 = vrot.lane.b32.xlu0 %v1081, 32
    %v1522 = vpop.permute.xlu0 %1521
    %v1525 = vsel %vm331, %v1494, 0
    %1527 = vmatpush.msra.mxu0 0.0
    %1528 = vmatpush.msra.mxu0 0.0
    %1529 = vmatpush.msra.mxu0 0.0
    %1530 = vmatpush.msra.mxu0 0.0
    %1531 = vmatpush.msra.mxu0 0.0
    %1532 = vmatpush.msra.mxu0 0.0
    %1533 = vmatpush.msra.mxu0 0.0
    %1534 = vmatpush.msra.mxu0 0.0
    %1535 = vmatpush.msra.mxu0 0.0
    %1536 = vmatpush.msra.mxu0 0.0
    %1537 = vmatpush.msra.mxu0 0.0
    %1538 = vmatpush.msra.mxu0 0.0
    %1539 = vmatpush.msra.mxu0 0.0
    %1540 = vmatpush.msra.mxu0 0.0
    %1541 = vmatpush.msra.mxu0 0.0
    %1542 = vmatpush.msra.mxu0 %v1522
    %1543 = vmatmul.f32.gmra.mxu0 %v1525
    %v1544 = vpop.f32.mrf.mxu0
    %v1545 = vadd.f32 0.0, %v1544
    %1546 = vdwg.mxu0
    %1547 = vrot.lane.b32.xlu0 %v1039, 80
    %v1548 = vpop.permute.xlu0 %1547
    %1549 = vrot.lane.b32.xlu0 %v1078, 80
    %v1550 = vpop.permute.xlu0 %1549
    %v1551 = vsel %vm279, %v1548, 0
    %v1553 = vsel %vm279, %v1550, 0
    %1555 = vmatpush.xpose.msra.mxu0 0.0
    %1556 = vmatpush.xpose.msra.mxu0 0.0
    %1557 = vmatpush.xpose.msra.mxu0 0.0
    %1558 = vmatpush.xpose.msra.mxu0 0.0
    %1559 = vmatpush.xpose.msra.mxu0 0.0
    %1560 = vmatpush.xpose.msra.mxu0 0.0
    %1561 = vmatpush.xpose.msra.mxu0 0.0
    %1562 = vmatpush.xpose.msra.mxu0 0.0
    %1563 = vmatpush.xpose.msra.mxu0 0.0
    %1564 = vmatpush.xpose.msra.mxu0 0.0
    %1565 = vmatpush.xpose.msra.mxu0 0.0
    %1566 = vmatpush.xpose.msra.mxu0 0.0
    %1567 = vmatpush.xpose.msra.mxu0 0.0
    %1568 = vmatpush.xpose.msra.mxu0 0.0
    %1569 = vmatpush.xpose.msra.mxu0 0.0
    %1570 = vmatpush.xpose.msra.mxu0 %v1553
    %1571 = vmatmul.f32.gmra.mxu0 %v1551
    %v1572 = vpop.f32.mrf.mxu0
    %v1573 = vadd.f32 0.0, %v1572
    %1574 = vdwg.mxu0
    %1575 = vrot.lane.b32.xlu0 %v1042, 80
    %v1576 = vpop.permute.xlu0 %1575
    %1577 = vrot.lane.b32.xlu0 %v1081, 80
    %v1578 = vpop.permute.xlu0 %1577
    %v1579 = vsel %vm279, %v1576, 0
    %v1581 = vsel %vm279, %v1578, 0
    %1583 = vmatpush.xpose.msra.mxu0 0.0
    %1584 = vmatpush.xpose.msra.mxu0 0.0
    %1585 = vmatpush.xpose.msra.mxu0 0.0
    %1586 = vmatpush.xpose.msra.mxu0 0.0
    %1587 = vmatpush.xpose.msra.mxu0 0.0
    %1588 = vmatpush.xpose.msra.mxu0 0.0
    %1589 = vmatpush.xpose.msra.mxu0 0.0
    %1590 = vmatpush.xpose.msra.mxu0 0.0
    %1591 = vmatpush.xpose.msra.mxu0 0.0
    %1592 = vmatpush.xpose.msra.mxu0 0.0
    %1593 = vmatpush.xpose.msra.mxu0 0.0
    %1594 = vmatpush.xpose.msra.mxu0 0.0
    %1595 = vmatpush.xpose.msra.mxu0 0.0
    %1596 = vmatpush.xpose.msra.mxu0 0.0
    %1597 = vmatpush.xpose.msra.mxu0 0.0
    %1598 = vmatpush.xpose.msra.mxu0 %v1581
    %1599 = vmatmul.f32.gmra.mxu0 %v1579
    %v1600 = vpop.f32.mrf.mxu0
    %v1601 = vadd.f32 0.0, %v1600
    %1602 = vdwg.mxu0
    %v1603 = vsel %vm331, %v1573, -inf
    %1604 = vmax.xlane.f32.xlu0 %v1603
    %v1605 = vpop.xlane.xlu0 %1604
    %v1606 = vsel %vm331, %v1601, -inf
    %1607 = vmax.xlane.f32.xlu0 %v1606
    %v1608 = vpop.xlane.xlu0 %1607
    %v1609 = vsub.f32 %v1573, %v1605
    %v1610 = vsub.f32 %v1601, %v1608
    %v1611 = vmul.f32 %v1609, 1.442695
    %v1612 = vpow.pop %v1611
    %v1613 = vmul.f32 %v1610, 1.442695
    %v1614 = vpow.pop %v1613
    %v1615 = vsel %vm331, %v1612, 0.0
    %1616 = vadd.xlane.f32.xlu0 %v1615
    %v1617 = vpop.xlane.xlu0 %1616
    %v1618 = vsel %vm331, %v1614, 0.0
    %1619 = vadd.xlane.f32.xlu0 %v1618
    %v1620 = vpop.xlane.xlu0 %1619
    %v1621 = vrcp.pop %v1617
    %v1622 = vmul.f32 %v1617, %v1621
    %v1623 = vsub.f32 1.0, %v1622
    %v1624 = vmul.f32 %v1621, %v1623
    %v1625 = vadd.f32 %v1621, %v1624
    %vm1626 = vweird.f32 %v1617
    %vm1627 = vweird.f32 %v1621
    %vm1628 = vmor %vm1626, %vm1627
    %v1629 = vsel %vm1628, %v1621, %v1625
    %v1630 = vand.u32 2147483647, %v1617
    %vm1631 = vcmp.eq.f32.partialorder %v1630, 8.507059e+37
    %v1632 = vand.u32 %v1617, 2147483648
    %v1633 = vor.u32 1.1754944e-38, %v1632
    %v1634 = vsel %vm1631, %v1633, %v1629
    %v1635 = vmul.f32 %v1612, %v1634
    %v1636 = vrcp.pop %v1620
    %v1637 = vmul.f32 %v1620, %v1636
    %v1638 = vsub.f32 1.0, %v1637
    %v1639 = vmul.f32 %v1636, %v1638
    %v1640 = vadd.f32 %v1636, %v1639
    %vm1641 = vweird.f32 %v1620
    %vm1642 = vweird.f32 %v1636
    %vm1643 = vmor %vm1641, %vm1642
    %v1644 = vsel %vm1643, %v1636, %v1640
    %v1645 = vand.u32 2147483647, %v1620
    %vm1646 = vcmp.eq.f32.partialorder %v1645, 8.507059e+37
    %v1647 = vand.u32 %v1620, 2147483648
    %v1648 = vor.u32 1.1754944e-38, %v1647
    %v1649 = vsel %vm1646, %v1648, %v1644
    %v1650 = vmul.f32 %v1614, %v1649
    %1651 = vrot.lane.b32.xlu0 %v1078, 16
    %v1652 = vpop.permute.xlu0 %1651
    %v1655 = vsel %vm331, %v1635, 0
    %1657 = vmatpush.msra.mxu0 0.0
    %1658 = vmatpush.msra.mxu0 0.0
    %1659 = vmatpush.msra.mxu0 0.0
    %1660 = vmatpush.msra.mxu0 0.0
    %1661 = vmatpush.msra.mxu0 0.0
    %1662 = vmatpush.msra.mxu0 0.0
    %1663 = vmatpush.msra.mxu0 0.0
    %1664 = vmatpush.msra.mxu0 0.0
    %1665 = vmatpush.msra.mxu0 0.0
    %1666 = vmatpush.msra.mxu0 0.0
    %1667 = vmatpush.msra.mxu0 0.0
    %1668 = vmatpush.msra.mxu0 0.0
    %1669 = vmatpush.msra.mxu0 0.0
    %1670 = vmatpush.msra.mxu0 0.0
    %1671 = vmatpush.msra.mxu0 0.0
    %1672 = vmatpush.msra.mxu0 %v1652
    %1673 = vmatmul.f32.gmra.mxu0 %v1655
    %v1674 = vpop.f32.mrf.mxu0
    %v1675 = vadd.f32 0.0, %v1674
    %1676 = vdwg.mxu0
    %1677 = vrot.lane.b32.xlu0 %v1081, 16
    %v1678 = vpop.permute.xlu0 %1677
    %v1681 = vsel %vm331, %v1650, 0
    %1683 = vmatpush.msra.mxu0 0.0
    %1684 = vmatpush.msra.mxu0 0.0
    %1685 = vmatpush.msra.mxu0 0.0
    %1686 = vmatpush.msra.mxu0 0.0
    %1687 = vmatpush.msra.mxu0 0.0
    %1688 = vmatpush.msra.mxu0 0.0
    %1689 = vmatpush.msra.mxu0 0.0
    %1690 = vmatpush.msra.mxu0 0.0
    %1691 = vmatpush.msra.mxu0 0.0
    %1692 = vmatpush.msra.mxu0 0.0
    %1693 = vmatpush.msra.mxu0 0.0
    %1694 = vmatpush.msra.mxu0 0.0
    %1695 = vmatpush.msra.mxu0 0.0
    %1696 = vmatpush.msra.mxu0 0.0
    %1697 = vmatpush.msra.mxu0 0.0
    %1698 = vmatpush.msra.mxu0 %v1678
    %1699 = vmatmul.f32.gmra.mxu0 %v1681
    %v1700 = vpop.f32.mrf.mxu0
    %v1701 = vadd.f32 0.0, %v1700
    %1702 = vdwg.mxu0
    %1705 = vrot.lane.b32.xlu0 %v1363, 16
    %v1706 = vpop.permute.xlu0 %1705
    %1707 = vrot.lane.b32.xlu0 %v1389, 16
    %v1708 = vpop.permute.xlu0 %1707
    %1713 = vrot.lane.b32.xlu0 %v1519, 32
    %v1714 = vpop.permute.xlu0 %1713
    %1715 = vrot.lane.b32.xlu0 %v1545, 32
    %v1716 = vpop.permute.xlu0 %1715
    %1721 = vrot.lane.b32.xlu0 %v1675, 48
    %v1722 = vpop.permute.xlu0 %1721
    %1723 = vrot.lane.b32.xlu0 %v1701, 48
    %v1724 = vpop.permute.xlu0 %1723
    %v1727 = vsel %vm279, %v1207, %v1706
    %v1728 = vsel %vm279, %v1233, %v1708
    %v1729 = vsel %vm922, %v1727, %v1714
    %v1730 = vsel %vm922, %v1728, %v1716
    %v1731 = vsel %vm925, %v1729, %v1722
    %v1732 = vsel %vm925, %v1730, %v1724
    %v1733 = vld [vmem:[#allocation11] sm:$0xff]
    %v1734 = vld [vmem:[#allocation11 + $0x8] sm:$0xff]
    %v1735 = vld [vmem:[#allocation11 + $0x10] sm:$0xff]
    %v1736 = vld [vmem:[#allocation11 + $0x18] sm:$0xff]
    %v1737 = vld [vmem:[#allocation11 + $0x20] sm:$0xff]
    %v1738 = vld [vmem:[#allocation11 + $0x28] sm:$0xff]
    %v1739 = vld [vmem:[#allocation11 + $0x30] sm:$0xff]
    %v1740 = vld [vmem:[#allocation11 + $0x38] sm:$0xff]
    %v1742 = vsel %vm159, %v1731, 0
    %v1745 = vsel %vm159, %v1732, 0
    %1747 = vmatpush.msra.mxu0 0.0
    %1748 = vmatpush.msra.mxu0 0.0
    %1749 = vmatpush.msra.mxu0 0.0
    %1750 = vmatpush.msra.mxu0 0.0
    %1751 = vmatpush.msra.mxu0 0.0
    %1752 = vmatpush.msra.mxu0 0.0
    %1753 = vmatpush.msra.mxu0 0.0
    %1754 = vmatpush.msra.mxu0 0.0
    %1755 = vmatpush.msra.mxu0 %v1740
    %1756 = vmatpush.msra.mxu0 %v1739
    %1757 = vmatpush.msra.mxu0 %v1738
    %1758 = vmatpush.msra.mxu0 %v1737
    %1759 = vmatpush.msra.mxu0 %v1736
    %1760 = vmatpush.msra.mxu0 %v1735
    %1761 = vmatpush.msra.mxu0 %v1734
    %1762 = vmatpush.msra.mxu0 %v1733
    %1763 = vmatmul.f32.gmra.mxu0 %v1742
    %v1764 = vpop.f32.mrf.mxu0
    %v1765 = vadd.f32 0.0, %v1764
    %1766 = vmatmul.f32.gmra.mxu0 %v1745
    %v1767 = vpop.f32.mrf.mxu0
    %v1768 = vadd.f32 0.0, %v1767
    %1769 = vdwg.mxu0
    %v1770 = vadd.f32 %v965, %v1765
    %v1771 = vadd.f32 %v966, %v1768
    %v1772 = vld [vmem:[%s5] sm:$0x1]
    %v1773 = vmul.f32 %v1770, %v1770
    %v1774 = vmul.f32 %v1771, %v1771
    %v1775 = vsel %vm159, %v1773, 0.0
    %1776 = vadd.xlane.f32.xlu0 %v1775
    %v1777 = vpop.xlane.xlu0 %1776
    %v1778 = vsel %vm159, %v1774, 0.0
    %1779 = vadd.xlane.f32.xlu0 %v1778
    %v1780 = vpop.xlane.xlu0 %1779
    %v1781 = vmul.f32 %v1777, %v172
    %v1782 = vmul.f32 %v1780, %v172
    %v1783 = vadd.f32 %v1781, 1e-06
    %v1784 = vadd.f32 %v1782, 1e-06
    %v1785 = vrsqrt.pop %v1783
    %v1786 = vmul.f32 %v1785, %v1783
    %v1787 = vmul.f32 %v1786, %v1785
    %v1788 = vmul.f32 0.5, %v1787
    %v1789 = vsub.f32 1.5, %v1788
    %v1790 = vmul.f32 %v1785, %v1789
    %vm1791 = vweird.f32 %v1783
    %vm1792 = vweird.f32 %v1785
    %vm1793 = vmor %vm1791, %vm1792
    %v1794 = vsel %vm1793, %v1785, %v1790
    %v1795 = vrsqrt.pop %v1784
    %v1796 = vmul.f32 %v1795, %v1784
    %v1797 = vmul.f32 %v1796, %v1795
    %v1798 = vmul.f32 0.5, %v1797
    %v1799 = vsub.f32 1.5, %v1798
    %v1800 = vmul.f32 %v1795, %v1799
    %vm1801 = vweird.f32 %v1784
    %vm1802 = vweird.f32 %v1795
    %vm1803 = vmor %vm1801, %vm1802
    %v1804 = vsel %vm1803, %v1795, %v1800
    %v1805 = vmul.f32 %v1770, %v1794
    %v1806 = vmul.f32 %v1771, %v1804
    %v1808 = vperm.slane %v1772, 0
    %v1810 = vmul.f32 %v1805, %v1808
    %v1811 = vmul.f32 %v1806, %v1808
    %v1812 = vld [vmem:[#allocation13] sm:$0xff]
    %v1813 = vld [vmem:[#allocation13 + $0x8] sm:$0xff]
    %v1814 = vld [vmem:[#allocation13 + $0x10] sm:$0xff]
    %v1815 = vld [vmem:[#allocation13 + $0x18] sm:$0xff]
    %v1816 = vld [vmem:[#allocation13 + $0x20] sm:$0xff]
    %v1817 = vld [vmem:[#allocation13 + $0x28] sm:$0xff]
    %v1818 = vld [vmem:[#allocation13 + $0x30] sm:$0xff]
    %v1819 = vld [vmem:[#allocation13 + $0x38] sm:$0xff]
    %v1821 = vsel %vm159, %v1810, 0
    %v1824 = vsel %vm159, %v1811, 0
    %1826 = vmatpush.msra.mxu0 0.0
    %1827 = vmatpush.msra.mxu0 0.0
    %1828 = vmatpush.msra.mxu0 0.0
    %1829 = vmatpush.msra.mxu0 0.0
    %1830 = vmatpush.msra.mxu0 0.0
    %1831 = vmatpush.msra.mxu0 0.0
    %1832 = vmatpush.msra.mxu0 0.0
    %1833 = vmatpush.msra.mxu0 0.0
    %1834 = vmatpush.msra.mxu0 %v1819
    %1835 = vmatpush.msra.mxu0 %v1818
    %1836 = vmatpush.msra.mxu0 %v1817
    %1837 = vmatpush.msra.mxu0 %v1816
    %1838 = vmatpush.msra.mxu0 %v1815
    %1839 = vmatpush.msra.mxu0 %v1814
    %1840 = vmatpush.msra.mxu0 %v1813
    %1841 = vmatpush.msra.mxu0 %v1812
    %1842 = vmatmul.f32.gmra.mxu0 %v1821
    %v1843 = vpop.f32.mrf.mxu0
    %v1844 = vadd.f32 0.0, %v1843
    %1845 = vmatmul.f32.gmra.mxu0 %v1824
    %v1846 = vpop.f32.mrf.mxu0
    %v1847 = vadd.f32 0.0, %v1846
    %1848 = vdwg.mxu0
    %v1849 = vmax.f32 %v1844, 0.0
    %v1850 = vmax.f32 %v1847, 0.0
    %v1851 = vld [vmem:[%s12] sm:$0xff]
    %v1852 = vld [vmem:[%s12 + $0x8] sm:$0xff]
    %v1853 = vld [vmem:[%s12 + $0x10] sm:$0xff]
    %v1854 = vld [vmem:[%s12 + $0x18] sm:$0xff]
    %v1855 = vld [vmem:[%s12 + $0x20] sm:$0xff]
    %v1856 = vld [vmem:[%s12 + $0x28] sm:$0xff]
    %v1857 = vld [vmem:[%s12 + $0x30] sm:$0xff]
    %v1858 = vld [vmem:[%s12 + $0x38] sm:$0xff]
    %v1859 = vld [vmem:[%s12 + $0x40] sm:$0xff]
    %v1860 = vld [vmem:[%s12 + $0x48] sm:$0xff]
    %v1861 = vld [vmem:[%s12 + $0x50] sm:$0xff]
    %v1862 = vld [vmem:[%s12 + $0x58] sm:$0xff]
    %v1863 = vld [vmem:[%s12 + $0x60] sm:$0xff]
    %v1864 = vld [vmem:[%s12 + $0x68] sm:$0xff]
    %v1865 = vld [vmem:[%s12 + $0x70] sm:$0xff]
    %v1866 = vld [vmem:[%s12 + $0x78] sm:$0xff]
    %1867 = vmatpush.msra.mxu0 %v1866
    %1868 = vmatpush.msra.mxu0 %v1865
    %1869 = vmatpush.msra.mxu0 %v1864
    %1870 = vmatpush.msra.mxu0 %v1863
    %1871 = vmatpush.msra.mxu0 %v1862
    %1872 = vmatpush.msra.mxu0 %v1861
    %1873 = vmatpush.msra.mxu0 %v1860
    %1874 = vmatpush.msra.mxu0 %v1859
    %1875 = vmatpush.msra.mxu0 %v1858
    %1876 = vmatpush.msra.mxu0 %v1857
    %1877 = vmatpush.msra.mxu0 %v1856
    %1878 = vmatpush.msra.mxu0 %v1855
    %1879 = vmatpush.msra.mxu0 %v1854
    %1880 = vmatpush.msra.mxu0 %v1853
    %1881 = vmatpush.msra.mxu0 %v1852
    %1882 = vmatpush.msra.mxu0 %v1851
    %1883 = vmatmul.f32.gmra.mxu0 %v1849
    %v1884 = vpop.f32.mrf.mxu0
    %v1885 = vadd.f32 0.0, %v1884
    %1886 = vmatmul.f32.gmra.mxu0 %v1850
    %v1887 = vpop.f32.mrf.mxu0
    %v1888 = vadd.f32 0.0, %v1887
    %1889 = vdwg.mxu0
    %v1890 = vadd.f32 %v1770, %v1885
    %v1891 = vadd.f32 %v1771, %v1888
    %1892 = vst.msk [vmem:[#allocation14] sm:$0xff] %vm159, %v1890
    %1893 = vst.msk [vmem:[#allocation14 + $0x8] sm:$0xff] %vm159, %v1891
    // Predicated region
    $region82: #{tpu_custom_call.1} parent=1 // pred_check
      _
    $region83: #{tpu_custom_call.1} parent=1 // pred_check_branch
      %1895 = sbr.rel (0) target = $region85
    $region84: #{tpu_custom_call.1} parent=1 // pred_region
      %1897 = vsyncadd [#allocation4], 0
      %s1898 = sshll.u32 [#allocation14], 4
      %s1899 = int_to_ptr.vmem [resolvable:$true] %s1898
      %s1900 = sshll.u32 %s13, 4
      %s1901 = int_to_ptr.hbm [resolvable:$true] %s1900
      %1906 = dma.vmem_to_hbm [thread:$0]  %s1899, 256, %s1901, [#allocation4], 128, 128, 8
    $region85: #{tpu_custom_call.1} parent=1 // pred_fallthru
      _
    // Predicated region
    $region86: #{tpu_custom_call.1} parent=1 // pred_check
      _
    $region87: #{tpu_custom_call.1} parent=1 // pred_check_branch
      %1908 = sbr.rel (0) target = $region89
    $region88: #{tpu_custom_call.1} parent=1 // pred_region
      %1910 = dma.done [#allocation4], 256
    $region89: #{tpu_custom_call.1} parent=1 // pred_fallthru
      _
    %1911 = vsyncpa [#allocation3], 1
    %1912 = vsyncpa [#allocation6], 1
    %1913 = vsyncpa [#allocation9], 1
    %1914 = vsyncpa [#allocation12], 1
    %1915 = vsyncpa [#allocation4], 1

</llo_original>
